<compile_context>
chip_gen: v7x
topology: tpu7x:2x2x1
jax: 0.10.0
libtpu: 0.0.40
codegen_flags: <defaults>
</compile_context>

<pallas_src>
import functools

import jax
import jax.numpy as jnp
from jax import lax
from jax.experimental import pallas as pl
from jax.experimental.pallas import tpu as pltpu

_VMEM_LIMIT = 48 * 1024 * 1024   # explicit scoped-VMEM budget (fits v7x 64 MiB physical)


def _rup8(n):
    return (n + 7) // 8 * 8


# ----------------------------------------------------------------------------
# Fused 3x3 conv kernel (one image per grid step).
#   - n_in inputs convolved with their own weight chunk into one accumulator
#     (== conv over channel-concatenated inputs -> fused skip concat).
#   - per-input static margin crop folded into the scratch fill.
#   - pad in {0,1} done in a VMEM scratch (border strips only are zeroed).
#   - optional per-channel (scale, shift) on input 0 = folded BatchNorm (pad=1 path).
#   - bias + PReLU fused epilogue; optional per-channel (sum, sumsq) BN-stat output.
# Ref order: x_0..x_{n-1}, w_0..w_{n-1}, bias, alpha(SMEM), [scale, shift],
#            out, [stats], acc_scratch, pad_scratch_0..pad_scratch_{n-1}.
# ----------------------------------------------------------------------------
def _conv3x3_kernel(*refs, n_in, pad, margins, has_affine, has_prelu, want_stats,
                    Ho, Wo, Wo_p, Hc, Wc):
    xs = refs[:n_in]
    ws = refs[n_in:2 * n_in]
    b_ref = refs[2 * n_in]
    a_ref = refs[2 * n_in + 1]
    k = 2 * n_in + 2
    if has_affine:
        scale_ref, shift_ref = refs[k], refs[k + 1]
        k += 2
    o_ref = refs[k]
    k += 1
    st_ref = None
    if want_stats:
        st_ref = refs[k]
        k += 1
    acc_ref = refs[k]
    scr_refs = refs[k + 1:]

    cout = o_ref.shape[-1]
    first = True
    for i in range(n_in):
        m = margins[i]
        scr = scr_refs[i]
        Hs, Ws, ci = scr.shape
        if pad:
            # zero only the pad border strips; the interior is fully overwritten below.
            scr[0:pad, :, :] = jnp.zeros((pad, Ws, ci), scr.dtype)
            scr[Hs - pad:Hs, :, :] = jnp.zeros((pad, Ws, ci), scr.dtype)
            scr[:, 0:pad, :] = jnp.zeros((Hs, pad, ci), scr.dtype)
            scr[:, pad + Wc:Ws, :] = jnp.zeros((Hs, Ws - pad - Wc, ci), scr.dtype)
        x = xs[i][0, m:m + Hc, m:m + Wc, :]
        if has_affine and i == 0:
            # folded BatchNorm of the producing layer (pad>=1 path): y = x*scale + shift
            x = x * scale_ref[0] + shift_ref[0]
        scr[pad:pad + Hc, pad:pad + Wc, :] = x.astype(scr.dtype)
        # 9 MXU dots (K = Cin), read straight from the scratch ref, accumulate in-place.
        for dy in range(3):
            for dx in range(3):
                lhs = scr[dy:dy + Ho, dx:dx + Wo_p, :].reshape(Ho * Wo_p, ci)
                d = jnp.dot(lhs, ws[i][dy * 3 + dx],
                            preferred_element_type=jnp.float32)
                if first:
                    acc_ref[...] = d
                    first = False
                else:
                    acc_ref[...] += d

    res = acc_ref[...] + b_ref[0]
    if has_prelu:
        alpha = a_ref[0]
        res = jnp.where(res > 0, res, res * alpha)
    res = res.reshape(Ho, Wo_p, cout)[:, :Wo, :]       # drop alignment-garbage columns
    if want_stats:
        st_ref[0, 0, :] = jnp.sum(res, axis=(0, 1))
        st_ref[0, 1, :] = jnp.sum(res * res, axis=(0, 1))
    o_ref[0] = res.astype(o_ref.dtype)


def conv3x3_fused(xs, ws, b, alpha=None, *, pad=0, margins=None, in_affine=None,
                  want_stats=False, out_dtype=jnp.float32):
    """Fused 3x3 conv over channel-concatenated NHWC inputs (real channel counts).

    xs:  list of (N, H_i, W_i, C_i) activations (f32 or bf16).
    ws:  list of (9, C_i, Cout) weights (tap index dy*3+dx), f32.
    b:   (Cout,) bias.
    in_affine: optional (scale, shift) of the producing layer's BatchNorm; folded into
        the weights/bias for pad=0, applied in-kernel during the scratch fill for pad=1.
    want_stats: also return per-image per-channel (sum, sumsq) of the result.
    """
    n_in = len(xs)
    assert pad in (0, 1), "kernel supports pad in {0, 1} only"
    margins = tuple(margins) if margins is not None else (0,) * n_in
    N = int(xs[0].shape[0])
    cins = [int(x.shape[-1]) for x in xs]
    cout = int(ws[0].shape[-1])
    Hc = int(xs[0].shape[1]) - 2 * margins[0]
    Wc = int(xs[0].shape[2]) - 2 * margins[0]
    for x, m in zip(xs, margins):
        assert int(x.shape[1]) - 2 * m == Hc and int(x.shape[2]) - 2 * m == Wc
    Ho = Hc + 2 * pad - 2
    Wo = Wc + 2 * pad - 2
    Wo_p = _rup8(Wo)
    Ws = _rup8(max(Wc + 2 * pad, Wo_p + 2))

    ws = [w.astype(jnp.float32) for w in ws]
    b = b.astype(jnp.float32)
    has_affine = False
    scale = shift = None
    if in_affine is not None:
        assert n_in == 1
        sc, sh = in_affine
        if pad == 0:
            # exact fold for valid convs: every window is fully interior
            b = b + jnp.einsum("kio,i->o", ws[0], sh)
            ws = [ws[0] * sc[None, :, None]]
        else:
            has_affine = True
            scale, shift = sc, sh
    ws_bf = [w.astype(jnp.bfloat16) for w in ws]
    has_prelu = alpha is not None
    a_arr = jnp.reshape(jnp.asarray(alpha if has_prelu else 0.0, jnp.float32), (1,))

    inputs = list(xs) + ws_bf + [jnp.reshape(b, (1, cout)), a_arr]
    in_specs = ([pl.BlockSpec((1,) + tuple(int(s) for s in x.shape[1:]),
                              lambda n: (n, 0, 0, 0)) for x in xs]
                + [pl.BlockSpec(tuple(int(s) for s in w.shape), lambda n: (0, 0, 0))
                   for w in ws_bf]
                + [pl.BlockSpec((1, cout), lambda n: (0, 0)),
                   pl.BlockSpec(memory_space=pltpu.MemorySpace.SMEM)])
    if has_affine:
        inputs += [jnp.reshape(scale, (1, cins[0])).astype(jnp.float32),
                   jnp.reshape(shift, (1, cins[0])).astype(jnp.float32)]
        in_specs += [pl.BlockSpec((1, cins[0]), lambda n: (0, 0))] * 2

    out_main = jax.ShapeDtypeStruct((N, Ho, Wo, cout), out_dtype)
    spec_main = pl.BlockSpec((1, Ho, Wo, cout), lambda n: (n, 0, 0, 0))
    if want_stats:
        out_shape = (out_main, jax.ShapeDtypeStruct((N, 2, cout), jnp.float32))
        out_specs = (spec_main, pl.BlockSpec((1, 2, cout), lambda n: (n, 0, 0)))
    else:
        out_shape = out_main
        out_specs = spec_main

    scratch = [pltpu.VMEM((Ho * Wo_p, cout), jnp.float32)]
    scratch += [pltpu.VMEM((Hc + 2 * pad, Ws, c), jnp.bfloat16) for c in cins]

    kernel = functools.partial(_conv3x3_kernel, n_in=n_in, pad=pad, margins=margins,
                               has_affine=has_affine, has_prelu=has_prelu,
                               want_stats=want_stats, Ho=Ho, Wo=Wo, Wo_p=Wo_p,
                               Hc=Hc, Wc=Wc)
    flops = 2 * N * Ho * Wo * 9 * sum(cins) * cout
    bytes_accessed = int(sum(int(v.size) * v.dtype.itemsize for v in inputs)
                         + N * Ho * Wo * cout * jnp.dtype(out_dtype).itemsize)
    return pl.pallas_call(
        kernel, out_shape=out_shape, grid=(N,), in_specs=in_specs, out_specs=out_specs,
        scratch_shapes=scratch,
        compiler_params=pltpu.CompilerParams(dimension_semantics=("parallel",),
                                             vmem_limit_bytes=_VMEM_LIMIT),
        cost_estimate=pl.CostEstimate(flops=int(flops), transcendentals=0,
                                      bytes_accessed=bytes_accessed),
    )(*inputs)


# ----------------------------------------------------------------------------
# Fused nearest-2x upsample + up_conv (3x3, pad=1) kernel.
# Reads the low-res input once; output row-parity `a` is an explicit output axis,
# output column-parity is packed into the channel axis (b*Cmid + co), so the result
# reshapes (free bitcast) to the full-res (N, 2H, 2W, Cmid) tensor in the wrapper.
# Ref order: x, w(12,Cin,2Cmid), bias2, [scale, shift], out, pad_scratch.
# ----------------------------------------------------------------------------
def _upconv2x_kernel(*refs, has_affine, Hl, Wl, Wl_p):
    x_ref, w_ref, b_ref = refs[0], refs[1], refs[2]
    k = 3
    if has_affine:
        scale_ref, shift_ref = refs[k], refs[k + 1]
        k += 2
    o_ref = refs[k]
    scr = refs[k + 1]
    Hs, Ws, ci = scr.shape
    c2 = o_ref.shape[-1]

    # zero only the 1-pixel pad border (+ alignment columns) of the low-res scratch
    scr[0:1, :, :] = jnp.zeros((1, Ws, ci), scr.dtype)
    scr[Hs - 1:Hs, :, :] = jnp.zeros((1, Ws, ci), scr.dtype)
    scr[:, 0:1, :] = jnp.zeros((Hs, 1, ci), scr.dtype)
    scr[:, 1 + Wl:Ws, :] = jnp.zeros((Hs, Ws - 1 - Wl, ci), scr.dtype)
    x = x_ref[0]
    if has_affine:
        x = x * scale_ref[0] + shift_ref[0]       # folded BN of the previous stage
    scr[1:1 + Hl, 1:1 + Wl, :] = x.astype(scr.dtype)

    for a in (0, 1):
        acc = None
        for dy2 in (0, 1):
            for ox in (0, 1, 2):
                lhs = scr[a + dy2:a + dy2 + Hl, ox:ox + Wl_p, :].reshape(Hl * Wl_p, ci)
                d = jnp.dot(lhs, w_ref[(a * 2 + dy2) * 3 + ox],
                            preferred_element_type=jnp.float32)
                acc = d if acc is None else acc + d
        val = (acc + b_ref[0]).reshape(Hl, Wl_p, c2)[:, :Wl, :]
        o_ref[:, a, :, :] = val.astype(o_ref.dtype)


def upconv2x_fused(x, w_up, b2, in_affine=None):
    N, Hl, Wl, cin = (int(s) for s in x.shape)
    c2 = int(w_up.shape[-1])                      # 2 * Cmid
    Wl_p = _rup8(Wl)
    Ws = _rup8(max(Wl + 2, Wl_p + 2))
    has_affine = in_affine is not None
    inputs = [x, w_up.astype(jnp.bfloat16),
              jnp.reshape(b2, (1, c2)).astype(jnp.float32)]
    in_specs = [pl.BlockSpec((1, Hl, Wl, cin), lambda n: (n, 0, 0, 0)),
                pl.BlockSpec((12, cin, c2), lambda n: (0, 0, 0)),
                pl.BlockSpec((1, c2), lambda n: (0, 0))]
    if has_affine:
        sc, sh = in_affine
        inputs += [jnp.reshape(sc, (1, cin)).astype(jnp.float32),
                   jnp.reshape(sh, (1, cin)).astype(jnp.float32)]
        in_specs += [pl.BlockSpec((1, cin), lambda n: (0, 0))] * 2
    kernel = functools.partial(_upconv2x_kernel, has_affine=has_affine,
                               Hl=Hl, Wl=Wl, Wl_p=Wl_p)
    flops = 2 * N * Hl * Wl * 16 * cin * (c2 // 2)
    bytes_accessed = int(sum(int(v.size) * v.dtype.itemsize for v in inputs)
                         + N * Hl * 2 * Wl * c2 * 2)
    out = pl.pallas_call(
        kernel,
        out_shape=jax.ShapeDtypeStruct((N * Hl, 2, Wl, c2), jnp.bfloat16),
        grid=(N,),
        in_specs=in_specs,
        out_specs=pl.BlockSpec((Hl, 2, Wl, c2), lambda n: (n, 0, 0, 0)),
        scratch_shapes=[pltpu.VMEM((Hl + 2, Ws, cin), jnp.bfloat16)],
        compiler_params=pltpu.CompilerParams(dimension_semantics=("parallel",),
                                             vmem_limit_bytes=_VMEM_LIMIT),
        cost_estimate=pl.CostEstimate(flops=int(flops), transcendentals=0,
                                      bytes_accessed=bytes_accessed),
    )(*inputs)
    # free bitcast: (N*Hl, 2, Wl, 2*Cmid) row-major == (N, 2*Hl, 2*Wl, Cmid)
    return out.reshape(N, 2 * Hl, 2 * Wl, c2 // 2)


# ----------------------------------------------------------------------------
# Parameter prep: reshape conv weights into tap-major layout; fold the nearest-2x
# upsample into the up_conv weights (parity decomposition).
# ----------------------------------------------------------------------------
_S = {(0, 0): (0,), (0, 1): (1, 2), (1, 0): (0, 1), (1, 1): (2,)}


def _prep_w9(w):
    return jnp.asarray(w, jnp.float32).reshape(9, w.shape[2], w.shape[3])


def _prep_upw(w):
    w = jnp.asarray(w, jnp.float32)
    cin, cm = int(w.shape[2]), int(w.shape[3])
    out = jnp.zeros((12, cin, 2 * cm), jnp.float32)
    for a in (0, 1):
        for dy2 in (0, 1):
            wrow = sum(w[dy] for dy in _S[(a, dy2)])             # (3, Cin, Cmid)
            for b in (0, 1):
                for dx2 in (0, 1):
                    ox = b + dx2
                    wcol = sum(wrow[dx] for dx in _S[(b, dx2)])  # (Cin, Cmid)
                    out = out.at[(a * 2 + dy2) * 3 + ox, :,
                                 b * cm:(b + 1) * cm].add(wcol)
    return out


def prep_pallas_params(params):
    stages = []
    for p in params["stages"]:
        up_out = int(p["up_w"].shape[3])            # in_chan // 2
        skip_ch = int(p["w1"].shape[2]) - up_out    # channels contributed by the skip
        stages.append(dict(
            up_w=_prep_upw(p["up_w"]),
            up_b2=jnp.concatenate([p["up_b"], p["up_b"]]).astype(jnp.float32),
            w1_skip=_prep_w9(p["w1"][:, :, :skip_ch, :]),
            w1_up=_prep_w9(p["w1"][:, :, skip_ch:, :]),
            b1=jnp.asarray(p["b1"], jnp.float32),
            w2=_prep_w9(p["w2"]), b2=jnp.asarray(p["b2"], jnp.float32),
            g1=p["g1"], beta1=p["beta1"], g2=p["g2"], beta2=p["beta2"],
            alpha=p["alpha"], margin=int(p["margin"]), pad=int(p["pad"]),
        ))
    return dict(stages=stages, cls_w=_prep_w9(params["cls_w"]),
                cls_b=jnp.asarray(params["cls_b"], jnp.float32))


# ----------------------------------------------------------------------------
# Glue (plain JAX): kernel-emitted (sum, sumsq) -> folded BN (scale, shift).
# ----------------------------------------------------------------------------
def _stats_to_affine(stats, count, gamma, beta, eps=1e-5):
    s = jnp.sum(stats[:, 0, :], axis=0)
    ss = jnp.sum(stats[:, 1, :], axis=0)
    mean = s / count
    var = jnp.maximum(ss / count - mean * mean, 0.0)
    scale = gamma * lax.rsqrt(var + eps)
    return scale, beta - mean * scale


# ----------------------------------------------------------------------------
# Pallas decoder forward (NCHW in / NCHW out, like the PyTorch module).
# ----------------------------------------------------------------------------
def unet_decoder_forward_pallas(ftr_nchw, layers_nchw, params_p, up_sample=0):
    ftr = jnp.transpose(ftr_nchw, (0, 2, 3, 1))                 # NHWC
    affine = None                                               # deferred BN (scale, shift)
    for l_nchw, p in zip(layers_nchw, params_p["stages"]):
        x1 = jnp.transpose(l_nchw, (0, 2, 3, 1))
        # nearest-2x upsample + up_conv (+ previous stage's BN) in one kernel
        xup = upconv2x_fused(ftr, p["up_w"], p["up_b2"], in_affine=affine)
        # conv_1: skip crop + concat + bias + PReLU + BN-stat reduction fused
        y, st1 = conv3x3_fused([x1, xup], [p["w1_skip"], p["w1_up"]], p["b1"],
                               alpha=p["alpha"], pad=p["pad"],
                               margins=(p["margin"], 0), want_stats=True,
                               out_dtype=jnp.bfloat16)
        aff1 = _stats_to_affine(st1, y.shape[0] * y.shape[1] * y.shape[2],
                                p["g1"], p["beta1"])
        # conv_2 consumes bn_1 (folded) and emits bn_2 statistics
        y, st2 = conv3x3_fused([y], [p["w2"]], p["b2"], alpha=p["alpha"],
                               pad=p["pad"], in_affine=aff1, want_stats=True,
                               out_dtype=jnp.bfloat16)
        affine = _stats_to_affine(st2, y.shape[0] * y.shape[1] * y.shape[2],
                                  p["g2"], p["beta2"])
        ftr = y
    if up_sample > 0:
        # per-channel BN affine commutes with bilinear resize (partition of unity),
        # so the deferred affine is still applied inside the classify kernel.
        N, H, W, C = ftr.shape
        ftr = jax.image.resize(ftr.astype(jnp.float32),
                               (N, H * up_sample, W * up_sample, C),
                               method="bilinear").astype(jnp.bfloat16)
    out = conv3x3_fused([ftr], [params_p["cls_w"]], params_p["cls_b"], pad=1,
                        in_affine=affine, out_dtype=jnp.float32)
    return jnp.transpose(out, (0, 3, 1, 2))


# ----------------------------------------------------------------------------
# Pure-JAX reference (same bf16-operand / f32-accumulate precision).
# ----------------------------------------------------------------------------
def conv3x3_ref(x, w, b, alpha=None, pad=0):
    y = lax.conv_general_dilated(
        x.astype(jnp.bfloat16), w.astype(jnp.bfloat16), window_strides=(1, 1),
        padding=[(pad, pad), (pad, pad)],
        dimension_numbers=("NHWC", "HWIO", "NHWC"),
        preferred_element_type=jnp.float32)
    y = y + b
    if alpha is not None:
        y = jnp.where(y > 0, y, alpha * y)
    return y


def batchnorm_train(x, gamma, beta, eps=1e-5):
    mean = jnp.mean(x, axis=(0, 1, 2), keepdims=True)
    var = jnp.mean(jnp.square(x - mean), axis=(0, 1, 2), keepdims=True)
    return (x - mean) * lax.rsqrt(var + eps) * gamma + beta


def upsample_nearest_2x(x):
    return jnp.repeat(jnp.repeat(x, 2, axis=1), 2, axis=2)


def unet_decoder_forward_ref(ftr_nchw, layers_nchw, params, up_sample=0):
    ftr = jnp.transpose(ftr_nchw, (0, 2, 3, 1))
    for l, p in zip(layers_nchw, params["stages"]):
        x1 = jnp.transpose(l, (0, 2, 3, 1))
        x = upsample_nearest_2x(ftr)
        x = conv3x3_ref(x, p["up_w"], p["up_b"], pad=1)
        m = p["margin"]
        if m:
            x1 = x1[:, m:-m, m:-m, :]
        x = jnp.concatenate([x1, x], axis=-1)
        x = conv3x3_ref(x, p["w1"], p["b1"], alpha=p["alpha"], pad=p["pad"])
        x = batchnorm_train(x, p["g1"], p["beta1"])
        x = conv3x3_ref(x, p["w2"], p["b2"], alpha=p["alpha"], pad=p["pad"])
        ftr = batchnorm_train(x, p["g2"], p["beta2"])
    if up_sample > 0:
        N, H, W, C = ftr.shape
        ftr = jax.image.resize(ftr, (N, H * up_sample, W * up_sample, C),
                               method="bilinear")
    out = conv3x3_ref(ftr, params["cls_w"], params["cls_b"], pad=1)
    return jnp.transpose(out, (0, 3, 1, 2))


# ----------------------------------------------------------------------------
# Deterministic parameter construction (matches module __init__ shapes).
# ----------------------------------------------------------------------------
def init_params(key, in_chans, out_chans, conv_chans, margins, n_class, pad):
    def w_(k, cin, cout):
        return 0.1 * jax.random.normal(k, (3, 3, cin, cout), jnp.float32)

    def b_(k, cout):
        return 0.05 * jax.random.normal(k, (cout,), jnp.float32)

    stages = []
    for i, o, c, m in zip(in_chans, out_chans, conv_chans, margins):
        key, *ks = jax.random.split(key, 7)
        stages.append(dict(
            up_w=w_(ks[0], i, i // 2), up_b=b_(ks[1], i // 2),
            w1=w_(ks[2], c, o), b1=b_(ks[3], o),
            w2=w_(ks[4], o, o), b2=b_(ks[5], o),
            g1=jnp.full((o,), 1.1, jnp.float32), beta1=jnp.full((o,), 0.05, jnp.float32),
            g2=jnp.full((o,), 0.9, jnp.float32), beta2=jnp.full((o,), -0.05, jnp.float32),
            alpha=jnp.float32(0.25),              # nn.PReLU() default (shared scalar)
            margin=m, pad=pad,
        ))
    kc1, kc2 = jax.random.split(key)
    return dict(
        stages=stages,
        cls_w=0.1 * jax.random.normal(kc1, (3, 3, out_chans[-1], n_class), jnp.float32),
        cls_b=0.05 * jax.random.normal(kc2, (n_class,), jnp.float32),
    )


if __name__ == "__main__":
    key = jax.random.PRNGKey(0)

    # Small UnetDecoder config: 2 decoder stages, valid convs (pad=0), margins crop skips.
    in_chans = [8, 8]
    out_chans = [8, 4]
    margins = [2, 1]
    conv_chans = in_chans          # conv_chan=None -> defaults to in_chans
    n_class = 3
    pad = 0
    up_sample = 0

    kp, kf, k0, k1 = jax.random.split(key, 4)
    params = init_params(kp, in_chans, out_chans, conv_chans, margins, n_class, pad)
    params_p = prep_pallas_params(params)

    # skip-connection channels = conv_chan - in_chan // 2
    ftr = jax.random.normal(kf, (2, in_chans[0], 8, 8), jnp.float32)                   # NCHW
    l0 = jax.random.normal(k0, (2, conv_chans[0] - in_chans[0] // 2, 20, 20), jnp.float32)
    l1 = jax.random.normal(k1, (2, conv_chans[1] - in_chans[1] // 2, 26, 26), jnp.float32)
    layers = [l0, l1]

    out = unet_decoder_forward_pallas(ftr, layers, params_p, up_sample)
    out = jax.block_until_ready(out)

    ref = unet_decoder_forward_ref(ftr, layers, params, up_sample)
    assert out.shape == (2, n_class, 20, 20), out.shape
    assert jnp.allclose(out, ref, atol=5e-2, rtol=5e-2), \
        float(jnp.max(jnp.abs(out - ref)))

    print("KERNEL_OK")
</pallas_src>

<mosaic_0001>
module attributes {stable_mosaic.version = 11 : i64} {
  func.func @_upconv2x_kernel(%arg0: i32, %arg1: memref<1x8x8x8xf32, #tpu.memory_space<vmem>>, %arg2: memref<12x8x8xbf16, #tpu.memory_space<vmem>>, %arg3: memref<1x8xf32, #tpu.memory_space<vmem>>, %arg4: memref<8x2x8x8xbf16, #tpu.memory_space<vmem>>, %arg5: memref<10x16x8xbf16, #tpu.memory_space<vmem>>) attributes {dimension_semantics = [#tpu.dimension_semantics<parallel>], iteration_bounds = array<i64: 2>, scalar_prefetch = 0 : i64, scratch_operands = 1 : i64, tpu.core_type = #tpu.core_type<tc>, window_params = [{transform_indices = @transform_0, window_bounds = array<i64: 1, 8, 8, 8>}, {pipeline_mode = #tpu.pipeline_mode<synchronous>, transform_indices = @transform_1, window_bounds = array<i64: 12, 8, 8>}, {pipeline_mode = #tpu.pipeline_mode<synchronous>, transform_indices = @transform_2, window_bounds = array<i64: 1, 8>}, {transform_indices = @transform_3, window_bounds = array<i64: 8, 2, 8, 8>}]} {
    %cst = arith.constant 0.000000e+00 : bf16
    %0 = vector.broadcast %cst : bf16 to vector<1x16x8xbf16>
    %c0 = arith.constant 0 : index
    %c0_0 = arith.constant 0 : index
    %c0_1 = arith.constant 0 : index
    %1 = vector.load %arg5[%c0, %c0_0, %c0_1] : memref<10x16x8xbf16, #tpu.memory_space<vmem>>, vector<1x16x8xbf16>
    tpu.vector_store %arg5[%c0, %c0_0, %c0_1], %0 {strides = array<i32>} : memref<10x16x8xbf16, #tpu.memory_space<vmem>>, vector<1x16x8xbf16>,
    %cst_2 = arith.constant 0.000000e+00 : bf16
    %2 = vector.broadcast %cst_2 : bf16 to vector<1x16x8xbf16>
    %c9 = arith.constant 9 : index
    %c0_3 = arith.constant 0 : index
    %c0_4 = arith.constant 0 : index
    %3 = vector.load %arg5[%c9, %c0_3, %c0_4] : memref<10x16x8xbf16, #tpu.memory_space<vmem>>, vector<1x16x8xbf16>
    tpu.vector_store %arg5[%c9, %c0_3, %c0_4], %2 {strides = array<i32>} : memref<10x16x8xbf16, #tpu.memory_space<vmem>>, vector<1x16x8xbf16>,
    %cst_5 = arith.constant 0.000000e+00 : bf16
    %4 = vector.broadcast %cst_5 : bf16 to vector<10x1x8xbf16>
    %c0_6 = arith.constant 0 : index
    %c0_7 = arith.constant 0 : index
    %c0_8 = arith.constant 0 : index
    %5 = vector.load %arg5[%c0_6, %c0_7, %c0_8] : memref<10x16x8xbf16, #tpu.memory_space<vmem>>, vector<10x1x8xbf16>
    tpu.vector_store %arg5[%c0_6, %c0_7, %c0_8], %4 {strides = array<i32>} : memref<10x16x8xbf16, #tpu.memory_space<vmem>>, vector<10x1x8xbf16>,
    %cst_9 = arith.constant 0.000000e+00 : bf16
    %6 = vector.broadcast %cst_9 : bf16 to vector<10x7x8xbf16>
    %c0_10 = arith.constant 0 : index
    %c9_11 = arith.constant 9 : index
    %c0_12 = arith.constant 0 : index
    %7 = vector.load %arg5[%c0_10, %c9_11, %c0_12] : memref<10x16x8xbf16, #tpu.memory_space<vmem>>, vector<10x7x8xbf16>
    tpu.vector_store %arg5[%c0_10, %c9_11, %c0_12], %6 {strides = array<i32>} : memref<10x16x8xbf16, #tpu.memory_space<vmem>>, vector<10x7x8xbf16>,
    %c0_13 = arith.constant 0 : index
    %c0_14 = arith.constant 0 : index
    %c0_15 = arith.constant 0 : index
    %c0_16 = arith.constant 0 : index
    %8 = vector.load %arg1[%c0_13, %c0_14, %c0_15, %c0_16] : memref<1x8x8x8xf32, #tpu.memory_space<vmem>>, vector<1x8x8x8xf32>
    %9 = vector.shape_cast %8 : vector<1x8x8x8xf32> to vector<8x8x8xf32>
    %10 = arith.truncf %9 : vector<8x8x8xf32> to vector<8x8x8xbf16>
    %c1 = arith.constant 1 : index
    %c1_17 = arith.constant 1 : index
    %c0_18 = arith.constant 0 : index
    %11 = vector.load %arg5[%c1, %c1_17, %c0_18] : memref<10x16x8xbf16, #tpu.memory_space<vmem>>, vector<8x8x8xbf16>
    tpu.vector_store %arg5[%c1, %c1_17, %c0_18], %10 {strides = array<i32>} : memref<10x16x8xbf16, #tpu.memory_space<vmem>>, vector<8x8x8xbf16>,
    %c0_19 = arith.constant 0 : index
    %c0_20 = arith.constant 0 : index
    %c0_21 = arith.constant 0 : index
    %12 = vector.load %arg5[%c0_19, %c0_20, %c0_21] : memref<10x16x8xbf16, #tpu.memory_space<vmem>>, vector<8x8x8xbf16>
    %13 = vector.shape_cast %12 : vector<8x8x8xbf16> to vector<64x8xbf16>
    %c0_22 = arith.constant 0 : index
    %c0_23 = arith.constant 0 : index
    %c0_24 = arith.constant 0 : index
    %14 = vector.load %arg2[%c0_22, %c0_23, %c0_24] : memref<12x8x8xbf16, #tpu.memory_space<vmem>>, vector<1x8x8xbf16>
    %15 = vector.shape_cast %14 : vector<1x8x8xbf16> to vector<8x8xbf16>
    %cst_25 = arith.constant dense<0.000000e+00> : vector<64x8xf32>
    %16 = tpu.matmul %13, %15, %cst_25 {dimension_numbers = #tpu.dot_dimension_numbers<[1], [0], [0], [1], [0, 0, 1, 1], [], []>} : vector<64x8xbf16>, vector<8x8xbf16>, vector<64x8xf32> -> vector<64x8xf32>
    %c0_26 = arith.constant 0 : index
    %c1_27 = arith.constant 1 : index
    %c0_28 = arith.constant 0 : index
    %17 = vector.load %arg5[%c0_26, %c1_27, %c0_28] : memref<10x16x8xbf16, #tpu.memory_space<vmem>>, vector<8x8x8xbf16>
    %18 = vector.shape_cast %17 : vector<8x8x8xbf16> to vector<64x8xbf16>
    %c1_29 = arith.constant 1 : index
    %c0_30 = arith.constant 0 : index
    %c0_31 = arith.constant 0 : index
    %19 = vector.load %arg2[%c1_29, %c0_30, %c0_31] : memref<12x8x8xbf16, #tpu.memory_space<vmem>>, vector<1x8x8xbf16>
    %20 = vector.shape_cast %19 : vector<1x8x8xbf16> to vector<8x8xbf16>
    %cst_32 = arith.constant dense<0.000000e+00> : vector<64x8xf32>
    %21 = tpu.matmul %18, %20, %cst_32 {dimension_numbers = #tpu.dot_dimension_numbers<[1], [0], [0], [1], [0, 0, 1, 1], [], []>} : vector<64x8xbf16>, vector<8x8xbf16>, vector<64x8xf32> -> vector<64x8xf32>
    %22 = arith.addf %16, %21 : vector<64x8xf32>
    %c0_33 = arith.constant 0 : index
    %c2 = arith.constant 2 : index
    %c0_34 = arith.constant 0 : index
    %23 = vector.load %arg5[%c0_33, %c2, %c0_34] : memref<10x16x8xbf16, #tpu.memory_space<vmem>>, vector<8x8x8xbf16>
    %24 = vector.shape_cast %23 : vector<8x8x8xbf16> to vector<64x8xbf16>
    %c2_35 = arith.constant 2 : index
    %c0_36 = arith.constant 0 : index
    %c0_37 = arith.constant 0 : index
    %25 = vector.load %arg2[%c2_35, %c0_36, %c0_37] : memref<12x8x8xbf16, #tpu.memory_space<vmem>>, vector<1x8x8xbf16>
    %26 = vector.shape_cast %25 : vector<1x8x8xbf16> to vector<8x8xbf16>
    %cst_38 = arith.constant dense<0.000000e+00> : vector<64x8xf32>
    %27 = tpu.matmul %24, %26, %cst_38 {dimension_numbers = #tpu.dot_dimension_numbers<[1], [0], [0], [1], [0, 0, 1, 1], [], []>} : vector<64x8xbf16>, vector<8x8xbf16>, vector<64x8xf32> -> vector<64x8xf32>
    %28 = arith.addf %22, %27 : vector<64x8xf32>
    %c1_39 = arith.constant 1 : index
    %c0_40 = arith.constant 0 : index
    %c0_41 = arith.constant 0 : index
    %29 = vector.load %arg5[%c1_39, %c0_40, %c0_41] : memref<10x16x8xbf16, #tpu.memory_space<vmem>>, vector<8x8x8xbf16>
    %30 = vector.shape_cast %29 : vector<8x8x8xbf16> to vector<64x8xbf16>
    %c3 = arith.constant 3 : index
    %c0_42 = arith.constant 0 : index
    %c0_43 = arith.constant 0 : index
    %31 = vector.load %arg2[%c3, %c0_42, %c0_43] : memref<12x8x8xbf16, #tpu.memory_space<vmem>>, vector<1x8x8xbf16>
    %32 = vector.shape_cast %31 : vector<1x8x8xbf16> to vector<8x8xbf16>
    %cst_44 = arith.constant dense<0.000000e+00> : vector<64x8xf32>
    %33 = tpu.matmul %30, %32, %cst_44 {dimension_numbers = #tpu.dot_dimension_numbers<[1], [0], [0], [1], [0, 0, 1, 1], [], []>} : vector<64x8xbf16>, vector<8x8xbf16>, vector<64x8xf32> -> vector<64x8xf32>
    %34 = arith.addf %28, %33 : vector<64x8xf32>
    %c1_45 = arith.constant 1 : index
    %c1_46 = arith.constant 1 : index
    %c0_47 = arith.constant 0 : index
    %35 = vector.load %arg5[%c1_45, %c1_46, %c0_47] : memref<10x16x8xbf16, #tpu.memory_space<vmem>>, vector<8x8x8xbf16>
    %36 = vector.shape_cast %35 : vector<8x8x8xbf16> to vector<64x8xbf16>
    %c4 = arith.constant 4 : index
    %c0_48 = arith.constant 0 : index
    %c0_49 = arith.constant 0 : index
    %37 = vector.load %arg2[%c4, %c0_48, %c0_49] : memref<12x8x8xbf16, #tpu.memory_space<vmem>>, vector<1x8x8xbf16>
    %38 = vector.shape_cast %37 : vector<1x8x8xbf16> to vector<8x8xbf16>
    %cst_50 = arith.constant dense<0.000000e+00> : vector<64x8xf32>
    %39 = tpu.matmul %36, %38, %cst_50 {dimension_numbers = #tpu.dot_dimension_numbers<[1], [0], [0], [1], [0, 0, 1, 1], [], []>} : vector<64x8xbf16>, vector<8x8xbf16>, vector<64x8xf32> -> vector<64x8xf32>
    %40 = arith.addf %34, %39 : vector<64x8xf32>
    %c1_51 = arith.constant 1 : index
    %c2_52 = arith.constant 2 : index
    %c0_53 = arith.constant 0 : index
    %41 = vector.load %arg5[%c1_51, %c2_52, %c0_53] : memref<10x16x8xbf16, #tpu.memory_space<vmem>>, vector<8x8x8xbf16>
    %42 = vector.shape_cast %41 : vector<8x8x8xbf16> to vector<64x8xbf16>
    %c5 = arith.constant 5 : index
    %c0_54 = arith.constant 0 : index
    %c0_55 = arith.constant 0 : index
    %43 = vector.load %arg2[%c5, %c0_54, %c0_55] : memref<12x8x8xbf16, #tpu.memory_space<vmem>>, vector<1x8x8xbf16>
    %44 = vector.shape_cast %43 : vector<1x8x8xbf16> to vector<8x8xbf16>
    %cst_56 = arith.constant dense<0.000000e+00> : vector<64x8xf32>
    %45 = tpu.matmul %42, %44, %cst_56 {dimension_numbers = #tpu.dot_dimension_numbers<[1], [0], [0], [1], [0, 0, 1, 1], [], []>} : vector<64x8xbf16>, vector<8x8xbf16>, vector<64x8xf32> -> vector<64x8xf32>
    %46 = arith.addf %40, %45 : vector<64x8xf32>
    %c0_57 = arith.constant 0 : index
    %c0_58 = arith.constant 0 : index
    %47 = vector.load %arg3[%c0_57, %c0_58] : memref<1x8xf32, #tpu.memory_space<vmem>>, vector<1x8xf32>
    %48 = vector.shape_cast %47 : vector<1x8xf32> to vector<8xf32>
    %49 = vector.shape_cast %48 : vector<8xf32> to vector<1x8xf32>
    %50 = vector.broadcast %49 : vector<1x8xf32> to vector<64x8xf32>
    %51 = arith.addf %46, %50 : vector<64x8xf32>
    %52 = vector.shape_cast %51 : vector<64x8xf32> to vector<8x8x8xf32>
    %53 = arith.truncf %52 : vector<8x8x8xf32> to vector<8x8x8xbf16>
    %c0_59 = arith.constant 0 : index
    %c0_60 = arith.constant 0 : index
    %c0_61 = arith.constant 0 : index
    %c0_62 = arith.constant 0 : index
    %54 = vector.load %arg4[%c0_59, %c0_60, %c0_61, %c0_62] : memref<8x2x8x8xbf16, #tpu.memory_space<vmem>>, vector<8x1x8x8xbf16>
    %55 = vector.shape_cast %54 : vector<8x1x8x8xbf16> to vector<8x8x8xbf16>
    %56 = vector.shape_cast %53 : vector<8x8x8xbf16> to vector<8x1x8x8xbf16>
    tpu.vector_store %arg4[%c0_59, %c0_60, %c0_61, %c0_62], %56 {strides = array<i32>} : memref<8x2x8x8xbf16, #tpu.memory_space<vmem>>, vector<8x1x8x8xbf16>,
    %c1_63 = arith.constant 1 : index
    %c0_64 = arith.constant 0 : index
    %c0_65 = arith.constant 0 : index
    %57 = vector.load %arg5[%c1_63, %c0_64, %c0_65] : memref<10x16x8xbf16, #tpu.memory_space<vmem>>, vector<8x8x8xbf16>
    %58 = vector.shape_cast %57 : vector<8x8x8xbf16> to vector<64x8xbf16>
    %c6 = arith.constant 6 : index
    %c0_66 = arith.constant 0 : index
    %c0_67 = arith.constant 0 : index
    %59 = vector.load %arg2[%c6, %c0_66, %c0_67] : memref<12x8x8xbf16, #tpu.memory_space<vmem>>, vector<1x8x8xbf16>
    %60 = vector.shape_cast %59 : vector<1x8x8xbf16> to vector<8x8xbf16>
    %cst_68 = arith.constant dense<0.000000e+00> : vector<64x8xf32>
    %61 = tpu.matmul %58, %60, %cst_68 {dimension_numbers = #tpu.dot_dimension_numbers<[1], [0], [0], [1], [0, 0, 1, 1], [], []>} : vector<64x8xbf16>, vector<8x8xbf16>, vector<64x8xf32> -> vector<64x8xf32>
    %c1_69 = arith.constant 1 : index
    %c1_70 = arith.constant 1 : index
    %c0_71 = arith.constant 0 : index
    %62 = vector.load %arg5[%c1_69, %c1_70, %c0_71] : memref<10x16x8xbf16, #tpu.memory_space<vmem>>, vector<8x8x8xbf16>
    %63 = vector.shape_cast %62 : vector<8x8x8xbf16> to vector<64x8xbf16>
    %c7 = arith.constant 7 : index
    %c0_72 = arith.constant 0 : index
    %c0_73 = arith.constant 0 : index
    %64 = vector.load %arg2[%c7, %c0_72, %c0_73] : memref<12x8x8xbf16, #tpu.memory_space<vmem>>, vector<1x8x8xbf16>
    %65 = vector.shape_cast %64 : vector<1x8x8xbf16> to vector<8x8xbf16>
    %cst_74 = arith.constant dense<0.000000e+00> : vector<64x8xf32>
    %66 = tpu.matmul %63, %65, %cst_74 {dimension_numbers = #tpu.dot_dimension_numbers<[1], [0], [0], [1], [0, 0, 1, 1], [], []>} : vector<64x8xbf16>, vector<8x8xbf16>, vector<64x8xf32> -> vector<64x8xf32>
    %67 = arith.addf %61, %66 : vector<64x8xf32>
    %c1_75 = arith.constant 1 : index
    %c2_76 = arith.constant 2 : index
    %c0_77 = arith.constant 0 : index
    %68 = vector.load %arg5[%c1_75, %c2_76, %c0_77] : memref<10x16x8xbf16, #tpu.memory_space<vmem>>, vector<8x8x8xbf16>
    %69 = vector.shape_cast %68 : vector<8x8x8xbf16> to vector<64x8xbf16>
    %c8 = arith.constant 8 : index
    %c0_78 = arith.constant 0 : index
    %c0_79 = arith.constant 0 : index
    %70 = vector.load %arg2[%c8, %c0_78, %c0_79] : memref<12x8x8xbf16, #tpu.memory_space<vmem>>, vector<1x8x8xbf16>
    %71 = vector.shape_cast %70 : vector<1x8x8xbf16> to vector<8x8xbf16>
    %cst_80 = arith.constant dense<0.000000e+00> : vector<64x8xf32>
    %72 = tpu.matmul %69, %71, %cst_80 {dimension_numbers = #tpu.dot_dimension_numbers<[1], [0], [0], [1], [0, 0, 1, 1], [], []>} : vector<64x8xbf16>, vector<8x8xbf16>, vector<64x8xf32> -> vector<64x8xf32>
    %73 = arith.addf %67, %72 : vector<64x8xf32>
    %c2_81 = arith.constant 2 : index
    %c0_82 = arith.constant 0 : index
    %c0_83 = arith.constant 0 : index
    %74 = vector.load %arg5[%c2_81, %c0_82, %c0_83] : memref<10x16x8xbf16, #tpu.memory_space<vmem>>, vector<8x8x8xbf16>
    %75 = vector.shape_cast %74 : vector<8x8x8xbf16> to vector<64x8xbf16>
    %c9_84 = arith.constant 9 : index
    %c0_85 = arith.constant 0 : index
    %c0_86 = arith.constant 0 : index
    %76 = vector.load %arg2[%c9_84, %c0_85, %c0_86] : memref<12x8x8xbf16, #tpu.memory_space<vmem>>, vector<1x8x8xbf16>
    %77 = vector.shape_cast %76 : vector<1x8x8xbf16> to vector<8x8xbf16>
    %cst_87 = arith.constant dense<0.000000e+00> : vector<64x8xf32>
    %78 = tpu.matmul %75, %77, %cst_87 {dimension_numbers = #tpu.dot_dimension_numbers<[1], [0], [0], [1], [0, 0, 1, 1], [], []>} : vector<64x8xbf16>, vector<8x8xbf16>, vector<64x8xf32> -> vector<64x8xf32>
    %79 = arith.addf %73, %78 : vector<64x8xf32>
    %c2_88 = arith.constant 2 : index
    %c1_89 = arith.constant 1 : index
    %c0_90 = arith.constant 0 : index
    %80 = vector.load %arg5[%c2_88, %c1_89, %c0_90] : memref<10x16x8xbf16, #tpu.memory_space<vmem>>, vector<8x8x8xbf16>
    %81 = vector.shape_cast %80 : vector<8x8x8xbf16> to vector<64x8xbf16>
    %c10 = arith.constant 10 : index
    %c0_91 = arith.constant 0 : index
    %c0_92 = arith.constant 0 : index
    %82 = vector.load %arg2[%c10, %c0_91, %c0_92] : memref<12x8x8xbf16, #tpu.memory_space<vmem>>, vector<1x8x8xbf16>
    %83 = vector.shape_cast %82 : vector<1x8x8xbf16> to vector<8x8xbf16>
    %cst_93 = arith.constant dense<0.000000e+00> : vector<64x8xf32>
    %84 = tpu.matmul %81, %83, %cst_93 {dimension_numbers = #tpu.dot_dimension_numbers<[1], [0], [0], [1], [0, 0, 1, 1], [], []>} : vector<64x8xbf16>, vector<8x8xbf16>, vector<64x8xf32> -> vector<64x8xf32>
    %85 = arith.addf %79, %84 : vector<64x8xf32>
    %c2_94 = arith.constant 2 : index
    %c2_95 = arith.constant 2 : index
    %c0_96 = arith.constant 0 : index
    %86 = vector.load %arg5[%c2_94, %c2_95, %c0_96] : memref<10x16x8xbf16, #tpu.memory_space<vmem>>, vector<8x8x8xbf16>
    %87 = vector.shape_cast %86 : vector<8x8x8xbf16> to vector<64x8xbf16>
    %c11 = arith.constant 11 : index
    %c0_97 = arith.constant 0 : index
    %c0_98 = arith.constant 0 : index
    %88 = vector.load %arg2[%c11, %c0_97, %c0_98] : memref<12x8x8xbf16, #tpu.memory_space<vmem>>, vector<1x8x8xbf16>
    %89 = vector.shape_cast %88 : vector<1x8x8xbf16> to vector<8x8xbf16>
    %cst_99 = arith.constant dense<0.000000e+00> : vector<64x8xf32>
    %90 = tpu.matmul %87, %89, %cst_99 {dimension_numbers = #tpu.dot_dimension_numbers<[1], [0], [0], [1], [0, 0, 1, 1], [], []>} : vector<64x8xbf16>, vector<8x8xbf16>, vector<64x8xf32> -> vector<64x8xf32>
    %91 = arith.addf %85, %90 : vector<64x8xf32>
    %c0_100 = arith.constant 0 : index
    %c0_101 = arith.constant 0 : index
    %92 = vector.load %arg3[%c0_100, %c0_101] : memref<1x8xf32, #tpu.memory_space<vmem>>, vector<1x8xf32>
    %93 = vector.shape_cast %92 : vector<1x8xf32> to vector<8xf32>
    %94 = vector.shape_cast %93 : vector<8xf32> to vector<1x8xf32>
    %95 = vector.broadcast %94 : vector<1x8xf32> to vector<64x8xf32>
    %96 = arith.addf %91, %95 : vector<64x8xf32>
    %97 = vector.shape_cast %96 : vector<64x8xf32> to vector<8x8x8xf32>
    %98 = arith.truncf %97 : vector<8x8x8xf32> to vector<8x8x8xbf16>
    %c0_102 = arith.constant 0 : index
    %c1_103 = arith.constant 1 : index
    %c0_104 = arith.constant 0 : index
    %c0_105 = arith.constant 0 : index
    %99 = vector.load %arg4[%c0_102, %c1_103, %c0_104, %c0_105] : memref<8x2x8x8xbf16, #tpu.memory_space<vmem>>, vector<8x1x8x8xbf16>
    %100 = vector.shape_cast %99 : vector<8x1x8x8xbf16> to vector<8x8x8xbf16>
    %101 = vector.shape_cast %98 : vector<8x8x8xbf16> to vector<8x1x8x8xbf16>
    tpu.vector_store %arg4[%c0_102, %c1_103, %c0_104, %c0_105], %101 {strides = array<i32>} : memref<8x2x8x8xbf16, #tpu.memory_space<vmem>>, vector<8x1x8x8xbf16>,
    return
  }
  func.func @transform_0(%arg0: i32) -> (i32, i32, i32, i32) {
    %c0_i32 = arith.constant 0 : i32
    %c0_i32_0 = arith.constant 0 : i32
    %c0_i32_1 = arith.constant 0 : i32
    %c0_i32_2 = arith.constant 0 : i32
    return %arg0, %c0_i32, %c0_i32_0, %c0_i32_1 : i32, i32, i32, i32
  }
  func.func @transform_1(%arg0: i32) -> (i32, i32, i32) {
    %c0_i32 = arith.constant 0 : i32
    %c0_i32_0 = arith.constant 0 : i32
    %c0_i32_1 = arith.constant 0 : i32
    %c0_i32_2 = arith.constant 0 : i32
    return %c0_i32, %c0_i32_0, %c0_i32_1 : i32, i32, i32
  }
  func.func @transform_2(%arg0: i32) -> (i32, i32) {
    %c0_i32 = arith.constant 0 : i32
    %c0_i32_0 = arith.constant 0 : i32
    %c0_i32_1 = arith.constant 0 : i32
    return %c0_i32, %c0_i32_0 : i32, i32
  }
  func.func @transform_3(%arg0: i32) -> (i32, i32, i32, i32) {
    %c0_i32 = arith.constant 0 : i32
    %c0_i32_0 = arith.constant 0 : i32
    %c0_i32_1 = arith.constant 0 : i32
    %c0_i32_2 = arith.constant 0 : i32
    return %arg0, %c0_i32, %c0_i32_0, %c0_i32_1 : i32, i32, i32, i32
  }
}

</mosaic_0001>

<llo_original>
// kernel: tpu_custom_call.1
$region0: #{tpu_custom_call.1}
  #allocation0 [shape = 'u32[]', space=smem, size = 0x4, offset = 0x4, fixed_abs, tag = 'smem constant byte address 0x4 - core index']
  #allocation1 [shape = 'u32[144,128]{1,0:T(1,128)}', space=vmem, size = 0x12000, scoped, tag = 'internal scratch']
  #allocation2 [shape = 'bf16[10,16,8]{2,1,0:T(16,128)(2,1)}', space=vmem, size = 0xa000, scoped, tag = 'scratch operand']
  %s0 = inlined_call_operand.hbm [shape: f32[2,8,8,8], index: 0, kind: input, shape index: {}]
  %s1 = inlined_call_operand.vmem [shape: bf16[12,8,8], index: 1, kind: input, shape index: {}]
  %s2 = inlined_call_operand.vmem [shape: f32[1,8], index: 2, kind: input, shape index: {}]
  %s3 = inlined_call_operand.vmem [shape: bf16[16,2,8,8], index: 3, kind: output, shape index: {}]
  %s4 = sld [smem:[#allocation0]]
  $region49: #{tpu_custom_call.1} parent=0
    _
  %s6 = ssub.s32 1, %s4
  %s7 = scalar_select 0, %s6, %s4
  $region1: #{tpu_custom_call.1} parent=0
    #allocation3 [shape = 'u8[65536]{0}', space=vmem, size = 0x10000, scoped, tag = 'input window, operand 0']
    #allocation4 [shape = 's32[2]{0}', space=sflag, size = 0x8, scoped, tag = 'scoped memory for tpu_custom_call.1']
    %8 = vsyncpa [#allocation4], 0
    %s9 = scalar_lea.sflag [#allocation4], 1
    %10 = vsyncpa %s9, 0
    loop: start=0, step=1, limit=4
    $region2: #{tpu_custom_call.1} parent=1 // loop_pre_header
      _
    $region3: #{tpu_custom_call.1} parent=1 // loop_header
      %s12 = sphi 0, %s16
      %p13 = scmp.ge.s32.totalorder %s12, 4
      %s22 = sphi 0, %s24
      %s25 = sphi 0, %s22
      %s26 = sphi 0, %s25
      %s42 = sphi 0, %s26
      %s46 = sphi 0, %s46
      %s48 = sphi 0, %s46
      %s49 = sphi 0, %s48
      %s63 = sphi 0, %s49
      %s67 = sphi 0, %s67
      %s69 = sphi 0, %s67
      %s70 = sphi 0, %s69
      %s84 = sphi 0, %s70
      %s90 = sphi 0, %s92
      %s93 = sphi 0, %s90
      %s94 = sphi 0, %s93
      %s110 = sphi 0, %s94
    $region4: #{tpu_custom_call.1} parent=1 // loop_header_branch
      %15 = sbr.rel (%p13) target = $region8
    $region5: #{tpu_custom_call.1} parent=1 // loop_body
      %s17 = ssub.s32 %s12, 1
      %s18 = ssub.s32 %s12, 2
      %s19 = sadd.s32 %s12, 1
      %s20 = ssub.s32 %s12, %s19
      %p21 = scmp.eq.s32.totalorder %s20, 0
      %s23 = sadd.s32 %s22, 1
      %s24 = scalar_select %p21, %s22, %s23
      %p27 = pneg %p21
      %p28 = scmp.eq.s32.totalorder %s12, 1
      %p29 = por %p27, %p28
      %p30 = scmp.ne.s32.totalorder %s22, %s25
      %p31 = scmp.eq.s32.totalorder %s12, 0
      %p32 = por %p30, %p31
      %p33 = scmp.ne.s32.totalorder %s22, %s25
      %p34 = scmp.eq.s32.totalorder %s17, 1
      %p35 = por %p33, %p34
      %p36 = scmp.ne.s32.totalorder %s25, %s26
      %p37 = scmp.eq.s32.totalorder %s17, 0
      %p38 = por %p36, %p37
      %p39 = scmp.ne.s32.totalorder %s25, %s26
      %p40 = scmp.eq.s32.totalorder %s18, 1
      %p41 = por %p39, %p40
      %p43 = scmp.ne.s32.totalorder %s26, %s42
      %p44 = scmp.eq.s32.totalorder %s18, 0
      %p45 = por %p43, %p44
      %s47 = sadd.s32 %s46, 1
      %p50 = scmp.eq.s32.totalorder %s12, 1
      %p51 = scmp.ne.s32.totalorder %s46, %s48
      %p52 = scmp.eq.s32.totalorder %s12, 0
      %p53 = por %p51, %p52
      %p54 = scmp.ne.s32.totalorder %s46, %s48
      %p55 = scmp.eq.s32.totalorder %s17, 1
      %p56 = por %p54, %p55
      %p57 = scmp.ne.s32.totalorder %s48, %s49
      %p58 = scmp.eq.s32.totalorder %s17, 0
      %p59 = por %p57, %p58
      %p60 = scmp.ne.s32.totalorder %s48, %s49
      %p61 = scmp.eq.s32.totalorder %s18, 1
      %p62 = por %p60, %p61
      %p64 = scmp.ne.s32.totalorder %s49, %s63
      %p65 = scmp.eq.s32.totalorder %s18, 0
      %p66 = por %p64, %p65
      %s68 = sadd.s32 %s67, 1
      %p71 = scmp.eq.s32.totalorder %s12, 1
      %p72 = scmp.ne.s32.totalorder %s67, %s69
      %p73 = scmp.eq.s32.totalorder %s12, 0
      %p74 = por %p72, %p73
      %p75 = scmp.ne.s32.totalorder %s67, %s69
      %p76 = scmp.eq.s32.totalorder %s17, 1
      %p77 = por %p75, %p76
      %p78 = scmp.ne.s32.totalorder %s69, %s70
      %p79 = scmp.eq.s32.totalorder %s17, 0
      %p80 = por %p78, %p79
      %p81 = scmp.ne.s32.totalorder %s69, %s70
      %p82 = scmp.eq.s32.totalorder %s18, 1
      %p83 = por %p81, %p82
      %p85 = scmp.ne.s32.totalorder %s70, %s84
      %p86 = scmp.eq.s32.totalorder %s18, 0
      %p87 = por %p85, %p86
      %s88 = ssub.s32 %s12, %s19
      %p89 = scmp.eq.s32.totalorder %s88, 0
      %s91 = sadd.s32 %s90, 1
      %s92 = scalar_select %p89, %s90, %s91
      %p95 = pneg %p89
      %p96 = scmp.eq.s32.totalorder %s12, 1
      %p97 = por %p95, %p96
      %p98 = scmp.ne.s32.totalorder %s90, %s93
      %p99 = scmp.eq.s32.totalorder %s12, 0
      %p100 = por %p98, %p99
      %p101 = scmp.ne.s32.totalorder %s90, %s93
      %p102 = scmp.eq.s32.totalorder %s17, 1
      %p103 = por %p101, %p102
      %p104 = scmp.ne.s32.totalorder %s93, %s94
      %p105 = scmp.eq.s32.totalorder %s17, 0
      %p106 = por %p104, %p105
      %p107 = scmp.ne.s32.totalorder %s93, %s94
      %p108 = scmp.eq.s32.totalorder %s18, 1
      %p109 = por %p107, %p108
      %p111 = scmp.ne.s32.totalorder %s94, %s110
      %p112 = scmp.eq.s32.totalorder %s18, 0
      %p113 = por %p111, %p112
      %p114 = scmp.le.s32.totalorder 1, %s12
      %p115 = scmp.lt.s32.totalorder %s12, 3
      %p116 = pnand %p114, %p115
      %p117 = pneg %p116
      // Predicated region
      $region9: #{tpu_custom_call.1} parent=5 // pred_check
        _
      $region10: #{tpu_custom_call.1} parent=5 // pred_check_branch
        %119 = sbr.rel (%p116) target = $region12
      $region11: #{tpu_custom_call.1} parent=5 // pred_region
        %s120 = ssub.s32 %s12, 1
        // Predicated region
        $region13: #{tpu_custom_call.1} parent=11 // pred_check
          %p121 = pneg %p59
        $region14: #{tpu_custom_call.1} parent=11 // pred_check_branch
          %123 = sbr.rel (%p121) target = $region16
        $region15: #{tpu_custom_call.1} parent=11 // pred_region
          _
        $region16: #{tpu_custom_call.1} parent=11 // pred_fallthru
          _
        // Predicated region
        $region17: #{tpu_custom_call.1} parent=11 // pred_check
          %p124 = pneg %p80
        $region18: #{tpu_custom_call.1} parent=11 // pred_check_branch
          %126 = sbr.rel (%p124) target = $region20
        $region19: #{tpu_custom_call.1} parent=11 // pred_region
          _
        $region20: #{tpu_custom_call.1} parent=11 // pred_fallthru
          _
      $region12: #{tpu_custom_call.1} parent=5 // pred_fallthru
        _
      %p127 = scmp.lt.s32.totalorder %s12, 2
      // Predicated region
      $region21: #{tpu_custom_call.1} parent=5 // pred_check
        %p128 = pneg %p127
      $region22: #{tpu_custom_call.1} parent=5 // pred_check_branch
        %130 = sbr.rel (%p128) target = $region24
      $region23: #{tpu_custom_call.1} parent=5 // pred_region
        // Predicated region
        $region25: #{tpu_custom_call.1} parent=23 // pred_check
          %p131 = pneg %p32
        $region26: #{tpu_custom_call.1} parent=23 // pred_check_branch
          %133 = sbr.rel (%p131) target = $region28
        $region27: #{tpu_custom_call.1} parent=23 // pred_region
          %s134 = sand.u32 %s22, 1
          %s135 = scalar_lea.sflag [#allocation4], %s134
          %s136 = sand.u32 %s22, 1
          %s137 = smul.addr %s136, 64
          %s138 = scalar_lea.vmem [#allocation3], %s137
          %s140 = ssub.s32 1024, 1024
          %141 = vsyncadd %s135, %s140
          %s142 = smul.addr %s12, 8
          %s143 = smul.addr %s142, 128
          %s144 = scalar_lea.hbm %s0, %s143
          %s145 = sshll.u32 %s138, 4
          %s146 = int_to_ptr.vmem [resolvable:$true] %s145
          %151 = dma.hbm_to_vmem [thread:$0]  %s144, 1024, %s146, %s135, 128, 128, 8
        $region28: #{tpu_custom_call.1} parent=23 // pred_fallthru
          _
      $region24: #{tpu_custom_call.1} parent=5 // pred_fallthru
        _
      %p152 = scmp.le.s32.totalorder 1, %s12
      %p153 = scmp.lt.s32.totalorder %s12, 3
      %p154 = pnand %p152, %p153
      %p155 = pneg %p154
      // Predicated region
      $region29: #{tpu_custom_call.1} parent=5 // pred_check
        _
      $region30: #{tpu_custom_call.1} parent=5 // pred_check_branch
        %157 = sbr.rel (%p154) target = $region32
      $region31: #{tpu_custom_call.1} parent=5 // pred_region
        %s158 = ssub.s32 %s12, 1
        %s159 = sand.u32 %s25, 1
        %s160 = scalar_lea.sflag [#allocation4], %s159
        %s161 = sand.u32 %s25, 1
        %s162 = smul.addr %s161, 64
        %s163 = scalar_lea.vmem [#allocation3], %s162
        // Predicated region
        $region33: #{tpu_custom_call.1} parent=31 // pred_check
          %p164 = pneg %p38
        $region34: #{tpu_custom_call.1} parent=31 // pred_check_branch
          %166 = sbr.rel (%p164) target = $region36
        $region35: #{tpu_custom_call.1} parent=31 // pred_region
          %167 = dma.done %s160, 1024
        $region36: #{tpu_custom_call.1} parent=31 // pred_fallthru
          _
        %s168 = sand.u32 %s25, 1
        %s169 = scalar_lea.sflag [#allocation4], %s168
        %s170 = sand.u32 %s25, 1
        %s171 = smul.addr %s170, 64
        %s172 = scalar_lea.vmem [#allocation3], %s171
        %p173 = pneg %p38
        %p174 = pneg %p35
        %p175 = pneg %p59
        %p176 = pneg %p56
        %p177 = pneg %p80
        %p178 = pneg %p77
        %p179 = pneg %p106
        %p180 = pneg %p103
        %s181 = smul.u32 8, %s17
        %p182 = scmp.lt.s32.totalorder %s181, 15
        %s183 = scalar_select %p182, %s181, 15
        %s184 = smul.addr %s183, 2
        %s185 = smul.addr %s184, 4
        %s186 = scalar_lea.vmem %s3, %s185
        %s187 = smul.u32 8, %s17
        %p188 = scmp.lt.s32.totalorder %s187, 15
        %s189 = scalar_select %p188, %s187, 15
        %s190 = smul.addr %s189, 2
        %s191 = smul.addr %s190, 4
        %s192 = scalar_lea.vmem %s3, %s191
        %s193 = smul.u32 8, %s17
        %vm195 = vcmask 64512
        %196 = vst.msk [vmem:[#allocation2] sm:$0xff] %vm195, 0
        %s197 = scalar_lea.vmem [#allocation2], 72
        %198 = vst.msk [vmem:[%s197] sm:$0xff] %vm195, 0
        %vm199 = vcmask 57344
        %vm200 = vsmask.f32 256
        %vm201 = vmand %vm199, %vm200
        %v202 = vld [vmem:[#allocation2] sm:$0x1]
        %v203 = vsel %vm201, 0, %v202
        %204 = vst [vmem:[#allocation2] sm:$0x1] %v203
        %v205 = vld [vmem:[#allocation2 + $0x8] sm:$0x1]
        %v206 = vsel %vm201, 0, %v205
        %207 = vst [vmem:[#allocation2 + $0x8] sm:$0x1] %v206
        %v208 = vld [vmem:[#allocation2 + $0x10] sm:$0x1]
        %v209 = vsel %vm201, 0, %v208
        %210 = vst [vmem:[#allocation2 + $0x10] sm:$0x1] %v209
        %v211 = vld [vmem:[#allocation2 + $0x18] sm:$0x1]
        %v212 = vsel %vm201, 0, %v211
        %213 = vst [vmem:[#allocation2 + $0x18] sm:$0x1] %v212
        %v214 = vld [vmem:[#allocation2 + $0x20] sm:$0x1]
        %v215 = vsel %vm201, 0, %v214
        %216 = vst [vmem:[#allocation2 + $0x20] sm:$0x1] %v215
        %v217 = vld [vmem:[#allocation2 + $0x28] sm:$0x1]
        %v218 = vsel %vm201, 0, %v217
        %219 = vst [vmem:[#allocation2 + $0x28] sm:$0x1] %v218
        %v220 = vld [vmem:[#allocation2 + $0x30] sm:$0x1]
        %v221 = vsel %vm201, 0, %v220
        %222 = vst [vmem:[#allocation2 + $0x30] sm:$0x1] %v221
        %v223 = vld [vmem:[#allocation2 + $0x38] sm:$0x1]
        %v224 = vsel %vm201, 0, %v223
        %225 = vst [vmem:[#allocation2 + $0x38] sm:$0x1] %v224
        %v226 = vld [vmem:[#allocation2 + $0x40] sm:$0x1]
        %v227 = vsel %vm201, 0, %v226
        %228 = vst [vmem:[#allocation2 + $0x40] sm:$0x1] %v227
        %v229 = vld [vmem:[#allocation2 + $0x48] sm:$0x1]
        %v230 = vsel %vm201, 0, %v229
        %231 = vst [vmem:[#allocation2 + $0x48] sm:$0x1] %v230
        %vm232 = vcmask 64516
        %vm233 = vsmask.f32 7954
        %vm234 = vmand %vm232, %vm233
        %v235 = vld [vmem:[#allocation2] sm:$0xf0]
        %v236 = vsel %vm234, 0, %v235
        %237 = vst [vmem:[#allocation2] sm:$0xf0] %v236
        %v238 = vld [vmem:[#allocation2 + $0x8] sm:$0xf0]
        %v239 = vsel %vm234, 0, %v238
        %240 = vst [vmem:[#allocation2 + $0x8] sm:$0xf0] %v239
        %v241 = vld [vmem:[#allocation2 + $0x10] sm:$0xf0]
        %v242 = vsel %vm234, 0, %v241
        %243 = vst [vmem:[#allocation2 + $0x10] sm:$0xf0] %v242
        %v244 = vld [vmem:[#allocation2 + $0x18] sm:$0xf0]
        %v245 = vsel %vm234, 0, %v244
        %246 = vst [vmem:[#allocation2 + $0x18] sm:$0xf0] %v245
        %v247 = vld [vmem:[#allocation2 + $0x20] sm:$0xf0]
        %v248 = vsel %vm234, 0, %v247
        %249 = vst [vmem:[#allocation2 + $0x20] sm:$0xf0] %v248
        %v250 = vld [vmem:[#allocation2 + $0x28] sm:$0xf0]
        %v251 = vsel %vm234, 0, %v250
        %252 = vst [vmem:[#allocation2 + $0x28] sm:$0xf0] %v251
        %v253 = vld [vmem:[#allocation2 + $0x30] sm:$0xf0]
        %v254 = vsel %vm234, 0, %v253
        %255 = vst [vmem:[#allocation2 + $0x30] sm:$0xf0] %v254
        %v256 = vld [vmem:[#allocation2 + $0x38] sm:$0xf0]
        %v257 = vsel %vm234, 0, %v256
        %258 = vst [vmem:[#allocation2 + $0x38] sm:$0xf0] %v257
        %v259 = vld [vmem:[#allocation2 + $0x40] sm:$0xf0]
        %v260 = vsel %vm234, 0, %v259
        %261 = vst [vmem:[#allocation2 + $0x40] sm:$0xf0] %v260
        %v262 = vld [vmem:[#allocation2 + $0x48] sm:$0xf0]
        %v263 = vsel %vm234, 0, %v262
        %264 = vst [vmem:[#allocation2 + $0x48] sm:$0xf0] %v263
        %v265 = vld [vmem:[%s163] sm:$0xff]
        %v266 = vld [vmem:[%s163 + $0x8] sm:$0xff]
        %v267 = vld [vmem:[%s163 + $0x10] sm:$0xff]
        %v268 = vld [vmem:[%s163 + $0x18] sm:$0xff]
        %v269 = vld [vmem:[%s163 + $0x20] sm:$0xff]
        %v270 = vld [vmem:[%s163 + $0x28] sm:$0xff]
        %v271 = vld [vmem:[%s163 + $0x30] sm:$0xff]
        %v272 = vld [vmem:[%s163 + $0x38] sm:$0xff]
        %v273 = vpack.c.bf16 %v265, %v265
        %v274 = vpack.c.bf16 %v266, %v266
        %v275 = vpack.c.bf16 %v267, %v267
        %v276 = vpack.c.bf16 %v268, %v268
        %v277 = vpack.c.bf16 %v269, %v269
        %v278 = vpack.c.bf16 %v270, %v270
        %v279 = vpack.c.bf16 %v271, %v271
        %v280 = vpack.c.bf16 %v272, %v272
        %v282 = vshrl.u32 %v273, 16
        %v284 = vrot.slane %v282, 7
        %v285 = vshll.u32 %v273, 16
        %v287 = vor.u32 %v284, %v285
        %v289 = vshrl.u32 %v274, 16
        %v291 = vrot.slane %v289, 7
        %v292 = vshll.u32 %v274, 16
        %v294 = vor.u32 %v291, %v292
        %v296 = vshrl.u32 %v275, 16
        %v298 = vrot.slane %v296, 7
        %v299 = vshll.u32 %v275, 16
        %v301 = vor.u32 %v298, %v299
        %v303 = vshrl.u32 %v276, 16
        %v305 = vrot.slane %v303, 7
        %v306 = vshll.u32 %v276, 16
        %v308 = vor.u32 %v305, %v306
        %v310 = vshrl.u32 %v277, 16
        %v312 = vrot.slane %v310, 7
        %v313 = vshll.u32 %v277, 16
        %v315 = vor.u32 %v312, %v313
        %v317 = vshrl.u32 %v278, 16
        %v319 = vrot.slane %v317, 7
        %v320 = vshll.u32 %v278, 16
        %v322 = vor.u32 %v319, %v320
        %v324 = vshrl.u32 %v279, 16
        %v326 = vrot.slane %v324, 7
        %v327 = vshll.u32 %v279, 16
        %v329 = vor.u32 %v326, %v327
        %v331 = vshrl.u32 %v280, 16
        %v333 = vrot.slane %v331, 7
        %v334 = vshll.u32 %v280, 16
        %v336 = vor.u32 %v333, %v334
        %s345 = scalar_lea.vmem [#allocation2], 8
        %vm346 = vcmask 61440
        %vm347 = vsmask.f32 4354
        %vm348 = vmand %vm346, %vm347
        %v349 = vld [vmem:[%s345] sm:$0x1f]
        %v350 = vsel %vm348, %v287, %v349
        %351 = vst [vmem:[%s345] sm:$0x1f] %v350
        %v352 = vld [vmem:[%s345 + $0x8] sm:$0x1f]
        %v353 = vsel %vm348, %v294, %v352
        %354 = vst [vmem:[%s345 + $0x8] sm:$0x1f] %v353
        %v355 = vld [vmem:[%s345 + $0x10] sm:$0x1f]
        %v356 = vsel %vm348, %v301, %v355
        %357 = vst [vmem:[%s345 + $0x10] sm:$0x1f] %v356
        %v358 = vld [vmem:[%s345 + $0x18] sm:$0x1f]
        %v359 = vsel %vm348, %v308, %v358
        %360 = vst [vmem:[%s345 + $0x18] sm:$0x1f] %v359
        %v361 = vld [vmem:[%s345 + $0x20] sm:$0x1f]
        %v362 = vsel %vm348, %v315, %v361
        %363 = vst [vmem:[%s345 + $0x20] sm:$0x1f] %v362
        %v364 = vld [vmem:[%s345 + $0x28] sm:$0x1f]
        %v365 = vsel %vm348, %v322, %v364
        %366 = vst [vmem:[%s345 + $0x28] sm:$0x1f] %v365
        %v367 = vld [vmem:[%s345 + $0x30] sm:$0x1f]
        %v368 = vsel %vm348, %v329, %v367
        %369 = vst [vmem:[%s345 + $0x30] sm:$0x1f] %v368
        %v370 = vld [vmem:[%s345 + $0x38] sm:$0x1f]
        %v371 = vsel %vm348, %v336, %v370
        %372 = vst [vmem:[%s345 + $0x38] sm:$0x1f] %v371
        %v373 = vld [vmem:[#allocation2] sm:$0xf]
        %v374 = vld [vmem:[#allocation2 + $0x8] sm:$0xf]
        %v375 = vld [vmem:[#allocation2 + $0x10] sm:$0xf]
        %v376 = vld [vmem:[#allocation2 + $0x18] sm:$0xf]
        %v377 = vld [vmem:[#allocation2 + $0x20] sm:$0xf]
        %v378 = vld [vmem:[#allocation2 + $0x28] sm:$0xf]
        %v379 = vld [vmem:[#allocation2 + $0x30] sm:$0xf]
        %v380 = vld [vmem:[#allocation2 + $0x38] sm:$0xf]
        %v381 = vld [vmem:[%s1] sm:$0xf]
        %v382 = vld [vmem:[#allocation2] sm:$0x1f]
        %v383 = vld [vmem:[#allocation2 + $0x8] sm:$0x1f]
        %v384 = vld [vmem:[#allocation2 + $0x10] sm:$0x1f]
        %v385 = vld [vmem:[#allocation2 + $0x18] sm:$0x1f]
        %v386 = vld [vmem:[#allocation2 + $0x20] sm:$0x1f]
        %v387 = vld [vmem:[#allocation2 + $0x28] sm:$0x1f]
        %v388 = vld [vmem:[#allocation2 + $0x30] sm:$0x1f]
        %v389 = vld [vmem:[#allocation2 + $0x38] sm:$0x1f]
        %v398 = vunpack.c.l.b16 %v382
        %v399 = vunpack.c.h.b16 %v382
        %v400 = vunpack.c.l.b16 %v383
        %v401 = vunpack.c.h.b16 %v383
        %v402 = vunpack.c.l.b16 %v384
        %v403 = vunpack.c.h.b16 %v384
        %v404 = vunpack.c.l.b16 %v385
        %v405 = vunpack.c.h.b16 %v385
        %v406 = vunpack.c.l.b16 %v386
        %v407 = vunpack.c.h.b16 %v386
        %v408 = vunpack.c.l.b16 %v387
        %v409 = vunpack.c.h.b16 %v387
        %v410 = vunpack.c.l.b16 %v388
        %v411 = vunpack.c.h.b16 %v388
        %v412 = vunpack.c.l.b16 %v389
        %v413 = vunpack.c.h.b16 %v389
        %v414 = vpack.c.b16 %v398, %v398
        %v415 = vpack.c.b16 %v399, %v399
        %v416 = vpack.c.b16 %v400, %v400
        %v417 = vpack.c.b16 %v401, %v401
        %v418 = vpack.c.b16 %v402, %v402
        %v419 = vpack.c.b16 %v403, %v403
        %v420 = vpack.c.b16 %v404, %v404
        %v421 = vpack.c.b16 %v405, %v405
        %v422 = vpack.c.b16 %v406, %v406
        %v423 = vpack.c.b16 %v407, %v407
        %v424 = vpack.c.b16 %v408, %v408
        %v425 = vpack.c.b16 %v409, %v409
        %v426 = vpack.c.b16 %v410, %v410
        %v427 = vpack.c.b16 %v411, %v411
        %v428 = vpack.c.b16 %v412, %v412
        %v429 = vpack.c.b16 %v413, %v413
        %vm430 = vsmask.f32 3328
        %vm431 = vsmask.f32 7440
        %vm432 = vmor %vm430, %vm431
        %v434 = vshrl.u32 %v414, 16
        %v436 = vrot.slane %v434, 4
        %v437 = vshll.u32 %v414, 16
        %v439 = vrot.slane %v437, 5
        %v440 = vor.u32 %v436, %v439
        %v441 = vrot.slane %v440, 4
        %v443 = vshll.u32 %v415, 16
        %v445 = vrot.slane %v443, 5
        %v446 = vsel %vm432, %v441, %v445
        %v448 = vshrl.u32 %v416, 16
        %v450 = vrot.slane %v448, 4
        %v451 = vshll.u32 %v416, 16
        %v453 = vrot.slane %v451, 5
        %v454 = vor.u32 %v450, %v453
        %v455 = vrot.slane %v454, 4
        %v457 = vshll.u32 %v417, 16
        %v459 = vrot.slane %v457, 5
        %v460 = vsel %vm432, %v455, %v459
        %v462 = vshrl.u32 %v418, 16
        %v464 = vrot.slane %v462, 4
        %v465 = vshll.u32 %v418, 16
        %v467 = vrot.slane %v465, 5
        %v468 = vor.u32 %v464, %v467
        %v469 = vrot.slane %v468, 4
        %v471 = vshll.u32 %v419, 16
        %v473 = vrot.slane %v471, 5
        %v474 = vsel %vm432, %v469, %v473
        %v476 = vshrl.u32 %v420, 16
        %v478 = vrot.slane %v476, 4
        %v479 = vshll.u32 %v420, 16
        %v481 = vrot.slane %v479, 5
        %v482 = vor.u32 %v478, %v481
        %v483 = vrot.slane %v482, 4
        %v485 = vshll.u32 %v421, 16
        %v487 = vrot.slane %v485, 5
        %v488 = vsel %vm432, %v483, %v487
        %v490 = vshrl.u32 %v422, 16
        %v492 = vrot.slane %v490, 4
        %v493 = vshll.u32 %v422, 16
        %v495 = vrot.slane %v493, 5
        %v496 = vor.u32 %v492, %v495
        %v497 = vrot.slane %v496, 4
        %v499 = vshll.u32 %v423, 16
        %v501 = vrot.slane %v499, 5
        %v502 = vsel %vm432, %v497, %v501
        %v504 = vshrl.u32 %v424, 16
        %v506 = vrot.slane %v504, 4
        %v507 = vshll.u32 %v424, 16
        %v509 = vrot.slane %v507, 5
        %v510 = vor.u32 %v506, %v509
        %v511 = vrot.slane %v510, 4
        %v513 = vshll.u32 %v425, 16
        %v515 = vrot.slane %v513, 5
        %v516 = vsel %vm432, %v511, %v515
        %v518 = vshrl.u32 %v426, 16
        %v520 = vrot.slane %v518, 4
        %v521 = vshll.u32 %v426, 16
        %v523 = vrot.slane %v521, 5
        %v524 = vor.u32 %v520, %v523
        %v525 = vrot.slane %v524, 4
        %v527 = vshll.u32 %v427, 16
        %v529 = vrot.slane %v527, 5
        %v530 = vsel %vm432, %v525, %v529
        %v532 = vshrl.u32 %v428, 16
        %v534 = vrot.slane %v532, 4
        %v535 = vshll.u32 %v428, 16
        %v537 = vrot.slane %v535, 5
        %v538 = vor.u32 %v534, %v537
        %v539 = vrot.slane %v538, 4
        %v541 = vshll.u32 %v429, 16
        %v543 = vrot.slane %v541, 5
        %v544 = vsel %vm432, %v539, %v543
        %s545 = scalar_lea.vmem %s1, 4
        %v546 = vld [vmem:[%s545] sm:$0xf]
        %v547 = vunpack.c.l.b16 %v446
        %v548 = vunpack.c.l.b16 %v460
        %v549 = vunpack.c.l.b16 %v474
        %v550 = vunpack.c.l.b16 %v488
        %v551 = vunpack.c.l.b16 %v502
        %v552 = vunpack.c.l.b16 %v516
        %v553 = vunpack.c.l.b16 %v530
        %v554 = vunpack.c.l.b16 %v544
        %v555 = vpack.c.b16 %v548, %v547
        %v556 = vpack.c.b16 %v550, %v549
        %v557 = vpack.c.b16 %v552, %v551
        %v558 = vpack.c.b16 %v554, %v553
        %v560 = vsel %vm195, %v555, 0
        %v563 = vsel %vm195, %v556, 0
        %v566 = vsel %vm195, %v557, 0
        %v569 = vsel %vm195, %v558, 0
        %vm571 = vcmask 1043456
        %v573 = vsel %vm571, %v546, 0
        %575 = vmatprep.subr.bf16.mxu0 0
        %576 = vmatpush1.bf16.msra.mxu0 %v573
        %577 = vmatprep.subr.bf16.mxu0 0
        %578 = vmatpush1.bf16.msra.mxu0 0
        %579 = vmatprep.subr.bf16.mxu0 0
        %580 = vmatpush1.bf16.msra.mxu0 0
        %581 = vmatprep.subr.bf16.mxu0 0
        %582 = vmatpush1.bf16.msra.mxu0 0
        %583 = vmatprep.subr.bf16.mxu0 0
        %584 = vmatpush1.bf16.msra.mxu0 0
        %585 = vmatprep.subr.bf16.mxu0 0
        %586 = vmatpush1.bf16.msra.mxu0 0
        %587 = vmatprep.subr.bf16.mxu0 0
        %588 = vmatpush1.bf16.msra.mxu0 0
        %589 = vmatprep.subr.bf16.mxu0 0
        %590 = vmatpush1.bf16.msra.mxu0 0
        %591 = vmatprep.subr.bf16.mxu0 0
        %592 = vmatpush1.bf16.msra.mxu0 0
        %593 = vmatprep.subr.bf16.mxu0 0
        %594 = vmatpush1.bf16.msra.mxu0 0
        %595 = vmatprep.subr.bf16.mxu0 0
        %596 = vmatpush1.bf16.msra.mxu0 0
        %597 = vmatprep.subr.bf16.mxu0 0
        %598 = vmatpush1.bf16.msra.mxu0 0
        %599 = vmatprep.subr.bf16.mxu0 0
        %600 = vmatpush1.bf16.msra.mxu0 0
        %601 = vmatprep.subr.bf16.mxu0 0
        %602 = vmatpush1.bf16.msra.mxu0 0
        %603 = vmatprep.subr.bf16.mxu0 0
        %604 = vmatpush1.bf16.msra.mxu0 0
        %605 = vmatprep.subr.bf16.mxu0 0
        %606 = vmatpush1.bf16.msra.mxu0 0
        %607 = vmatprep.mubr.bf16.mxu0 0
        %608 = vmatmul.mubr.bf16.gmra.mrb[0].mxu0 %v560
        %v609 = vpop.f32.mrb[0].mxu0
        %v610 = vadd.f32 0.0, %v609
        %v611 = vpop.f32.mrb[0].mxu0
        %v612 = vpop.f32.mrb[0].mxu0
        %v613 = vadd.f32 0.0, %v612
        %v614 = vpop.f32.mrb[0].mxu0
        %615 = vmatprep.mubr.bf16.mxu0 0
        %616 = vmatmul.mubr.bf16.gmra.mrb[0].mxu0 %v563
        %v617 = vpop.f32.mrb[0].mxu0
        %v618 = vadd.f32 0.0, %v617
        %v619 = vpop.f32.mrb[0].mxu0
        %v620 = vpop.f32.mrb[0].mxu0
        %v621 = vadd.f32 0.0, %v620
        %v622 = vpop.f32.mrb[0].mxu0
        %623 = vmatprep.mubr.bf16.mxu0 0
        %624 = vmatmul.mubr.bf16.gmra.mrb[0].mxu0 %v566
        %v625 = vpop.f32.mrb[0].mxu0
        %v626 = vadd.f32 0.0, %v625
        %v627 = vpop.f32.mrb[0].mxu0
        %v628 = vpop.f32.mrb[0].mxu0
        %v629 = vadd.f32 0.0, %v628
        %v630 = vpop.f32.mrb[0].mxu0
        %631 = vmatprep.mubr.bf16.mxu0 0
        %632 = vmatmul.mubr.bf16.gmra.mrb[0].mxu0 %v569
        %v633 = vpop.f32.mrb[0].mxu0
        %v634 = vadd.f32 0.0, %v633
        %v635 = vpop.f32.mrb[0].mxu0
        %v636 = vpop.f32.mrb[0].mxu0
        %v637 = vadd.f32 0.0, %v636
        %v638 = vpop.f32.mrb[0].mxu0
        %639 = vdwg.mxu0
        %v648 = vunpack.c.l.b16 %v373
        %v649 = vunpack.c.l.b16 %v374
        %v650 = vunpack.c.l.b16 %v375
        %v651 = vunpack.c.l.b16 %v376
        %v652 = vunpack.c.l.b16 %v377
        %v653 = vunpack.c.l.b16 %v378
        %v654 = vunpack.c.l.b16 %v379
        %v655 = vunpack.c.l.b16 %v380
        %v656 = vpack.c.b16 %v649, %v648
        %v657 = vpack.c.b16 %v651, %v650
        %v658 = vpack.c.b16 %v653, %v652
        %v659 = vpack.c.b16 %v655, %v654
        %v661 = vsel %vm195, %v656, 0
        %v664 = vsel %vm195, %v657, 0
        %v667 = vsel %vm195, %v658, 0
        %v670 = vsel %vm195, %v659, 0
        %v673 = vsel %vm571, %v381, 0
        %675 = vmatprep.subr.bf16.mxu0 0
        %676 = vmatpush1.bf16.msra.mxu0 %v673
        %677 = vmatprep.subr.bf16.mxu0 0
        %678 = vmatpush1.bf16.msra.mxu0 0
        %679 = vmatprep.subr.bf16.mxu0 0
        %680 = vmatpush1.bf16.msra.mxu0 0
        %681 = vmatprep.subr.bf16.mxu0 0
        %682 = vmatpush1.bf16.msra.mxu0 0
        %683 = vmatprep.subr.bf16.mxu0 0
        %684 = vmatpush1.bf16.msra.mxu0 0
        %685 = vmatprep.subr.bf16.mxu0 0
        %686 = vmatpush1.bf16.msra.mxu0 0
        %687 = vmatprep.subr.bf16.mxu0 0
        %688 = vmatpush1.bf16.msra.mxu0 0
        %689 = vmatprep.subr.bf16.mxu0 0
        %690 = vmatpush1.bf16.msra.mxu0 0
        %691 = vmatprep.subr.bf16.mxu0 0
        %692 = vmatpush1.bf16.msra.mxu0 0
        %693 = vmatprep.subr.bf16.mxu0 0
        %694 = vmatpush1.bf16.msra.mxu0 0
        %695 = vmatprep.subr.bf16.mxu0 0
        %696 = vmatpush1.bf16.msra.mxu0 0
        %697 = vmatprep.subr.bf16.mxu0 0
        %698 = vmatpush1.bf16.msra.mxu0 0
        %699 = vmatprep.subr.bf16.mxu0 0
        %700 = vmatpush1.bf16.msra.mxu0 0
        %701 = vmatprep.subr.bf16.mxu0 0
        %702 = vmatpush1.bf16.msra.mxu0 0
        %703 = vmatprep.subr.bf16.mxu0 0
        %704 = vmatpush1.bf16.msra.mxu0 0
        %705 = vmatprep.subr.bf16.mxu0 0
        %706 = vmatpush1.bf16.msra.mxu0 0
        %707 = vmatprep.mubr.bf16.mxu0 0
        %708 = vmatmul.mubr.bf16.gmra.mrb[0].mxu0 %v661
        %v709 = vpop.f32.mrb[0].mxu0
        %v710 = vadd.f32 %v610, %v709
        %v711 = vpop.f32.mrb[0].mxu0
        %v712 = vpop.f32.mrb[0].mxu0
        %v713 = vadd.f32 %v613, %v712
        %v714 = vpop.f32.mrb[0].mxu0
        %715 = vmatprep.mubr.bf16.mxu0 0
        %716 = vmatmul.mubr.bf16.gmra.mrb[0].mxu0 %v664
        %v717 = vpop.f32.mrb[0].mxu0
        %v718 = vadd.f32 %v618, %v717
        %v719 = vpop.f32.mrb[0].mxu0
        %v720 = vpop.f32.mrb[0].mxu0
        %v721 = vadd.f32 %v621, %v720
        %v722 = vpop.f32.mrb[0].mxu0
        %723 = vmatprep.mubr.bf16.mxu0 0
        %724 = vmatmul.mubr.bf16.gmra.mrb[0].mxu0 %v667
        %v725 = vpop.f32.mrb[0].mxu0
        %v726 = vadd.f32 %v626, %v725
        %v727 = vpop.f32.mrb[0].mxu0
        %v728 = vpop.f32.mrb[0].mxu0
        %v729 = vadd.f32 %v629, %v728
        %v730 = vpop.f32.mrb[0].mxu0
        %731 = vmatprep.mubr.bf16.mxu0 0
        %732 = vmatmul.mubr.bf16.gmra.mrb[0].mxu0 %v670
        %v733 = vpop.f32.mrb[0].mxu0
        %v734 = vadd.f32 %v634, %v733
        %v735 = vpop.f32.mrb[0].mxu0
        %v736 = vpop.f32.mrb[0].mxu0
        %v737 = vadd.f32 %v637, %v736
        %v738 = vpop.f32.mrb[0].mxu0
        %739 = vdwg.mxu0
        %v740 = vld [vmem:[#allocation2] sm:$0x1e]
        %v741 = vld [vmem:[#allocation2 + $0x8] sm:$0x1e]
        %v742 = vld [vmem:[#allocation2 + $0x10] sm:$0x1e]
        %v743 = vld [vmem:[#allocation2 + $0x18] sm:$0x1e]
        %v744 = vld [vmem:[#allocation2 + $0x20] sm:$0x1e]
        %v745 = vld [vmem:[#allocation2 + $0x28] sm:$0x1e]
        %v746 = vld [vmem:[#allocation2 + $0x30] sm:$0x1e]
        %v747 = vld [vmem:[#allocation2 + $0x38] sm:$0x1e]
        %v756 = vunpack.c.l.b16 %v740
        %v757 = vunpack.c.h.b16 %v740
        %v758 = vunpack.c.l.b16 %v741
        %v759 = vunpack.c.h.b16 %v741
        %v760 = vunpack.c.l.b16 %v742
        %v761 = vunpack.c.h.b16 %v742
        %v762 = vunpack.c.l.b16 %v743
        %v763 = vunpack.c.h.b16 %v743
        %v764 = vunpack.c.l.b16 %v744
        %v765 = vunpack.c.h.b16 %v744
        %v766 = vunpack.c.l.b16 %v745
        %v767 = vunpack.c.h.b16 %v745
        %v768 = vunpack.c.l.b16 %v746
        %v769 = vunpack.c.h.b16 %v746
        %v770 = vunpack.c.l.b16 %v747
        %v771 = vunpack.c.h.b16 %v747
        %v772 = vpack.c.b16 %v756, %v756
        %v773 = vpack.c.b16 %v757, %v757
        %v774 = vpack.c.b16 %v758, %v758
        %v775 = vpack.c.b16 %v759, %v759
        %v776 = vpack.c.b16 %v760, %v760
        %v777 = vpack.c.b16 %v761, %v761
        %v778 = vpack.c.b16 %v762, %v762
        %v779 = vpack.c.b16 %v763, %v763
        %v780 = vpack.c.b16 %v764, %v764
        %v781 = vpack.c.b16 %v765, %v765
        %v782 = vpack.c.b16 %v766, %v766
        %v783 = vpack.c.b16 %v767, %v767
        %v784 = vpack.c.b16 %v768, %v768
        %v785 = vpack.c.b16 %v769, %v769
        %v786 = vpack.c.b16 %v770, %v770
        %v787 = vpack.c.b16 %v771, %v771
        %vm788 = vcmask 1042432
        %vm789 = vcmask 1046532
        %vm790 = vmor %vm788, %vm789
        %v791 = vrot.slane %v772, 5
        %v792 = vrot.slane %v791, 4
        %v793 = vrot.slane %v773, 5
        %v794 = vsel %vm790, %v792, %v793
        %v795 = vrot.slane %v774, 5
        %v796 = vrot.slane %v795, 4
        %v797 = vrot.slane %v775, 5
        %v798 = vsel %vm790, %v796, %v797
        %v799 = vrot.slane %v776, 5
        %v800 = vrot.slane %v799, 4
        %v801 = vrot.slane %v777, 5
        %v802 = vsel %vm790, %v800, %v801
        %v803 = vrot.slane %v778, 5
        %v804 = vrot.slane %v803, 4
        %v805 = vrot.slane %v779, 5
        %v806 = vsel %vm790, %v804, %v805
        %v807 = vrot.slane %v780, 5
        %v808 = vrot.slane %v807, 4
        %v809 = vrot.slane %v781, 5
        %v810 = vsel %vm790, %v808, %v809
        %v811 = vrot.slane %v782, 5
        %v812 = vrot.slane %v811, 4
        %v813 = vrot.slane %v783, 5
        %v814 = vsel %vm790, %v812, %v813
        %v815 = vrot.slane %v784, 5
        %v816 = vrot.slane %v815, 4
        %v817 = vrot.slane %v785, 5
        %v818 = vsel %vm790, %v816, %v817
        %v819 = vrot.slane %v786, 5
        %v820 = vrot.slane %v819, 4
        %v821 = vrot.slane %v787, 5
        %v822 = vsel %vm790, %v820, %v821
        %s823 = scalar_lea.vmem %s1, 8
        %v824 = vld [vmem:[%s823] sm:$0xf]
        %v825 = vunpack.c.l.b16 %v794
        %v826 = vunpack.c.l.b16 %v798
        %v827 = vunpack.c.l.b16 %v802
        %v828 = vunpack.c.l.b16 %v806
        %v829 = vunpack.c.l.b16 %v810
        %v830 = vunpack.c.l.b16 %v814
        %v831 = vunpack.c.l.b16 %v818
        %v832 = vunpack.c.l.b16 %v822
        %v833 = vpack.c.b16 %v826, %v825
        %v834 = vpack.c.b16 %v828, %v827
        %v835 = vpack.c.b16 %v830, %v829
        %v836 = vpack.c.b16 %v832, %v831
        %v838 = vsel %vm195, %v833, 0
        %v841 = vsel %vm195, %v834, 0
        %v844 = vsel %vm195, %v835, 0
        %v847 = vsel %vm195, %v836, 0
        %v850 = vsel %vm571, %v824, 0
        %852 = vmatprep.subr.bf16.mxu0 0
        %853 = vmatpush1.bf16.msra.mxu0 %v850
        %854 = vmatprep.subr.bf16.mxu0 0
        %855 = vmatpush1.bf16.msra.mxu0 0
        %856 = vmatprep.subr.bf16.mxu0 0
        %857 = vmatpush1.bf16.msra.mxu0 0
        %858 = vmatprep.subr.bf16.mxu0 0
        %859 = vmatpush1.bf16.msra.mxu0 0
        %860 = vmatprep.subr.bf16.mxu0 0
        %861 = vmatpush1.bf16.msra.mxu0 0
        %862 = vmatprep.subr.bf16.mxu0 0
        %863 = vmatpush1.bf16.msra.mxu0 0
        %864 = vmatprep.subr.bf16.mxu0 0
        %865 = vmatpush1.bf16.msra.mxu0 0
        %866 = vmatprep.subr.bf16.mxu0 0
        %867 = vmatpush1.bf16.msra.mxu0 0
        %868 = vmatprep.subr.bf16.mxu0 0
        %869 = vmatpush1.bf16.msra.mxu0 0
        %870 = vmatprep.subr.bf16.mxu0 0
        %871 = vmatpush1.bf16.msra.mxu0 0
        %872 = vmatprep.subr.bf16.mxu0 0
        %873 = vmatpush1.bf16.msra.mxu0 0
        %874 = vmatprep.subr.bf16.mxu0 0
        %875 = vmatpush1.bf16.msra.mxu0 0
        %876 = vmatprep.subr.bf16.mxu0 0
        %877 = vmatpush1.bf16.msra.mxu0 0
        %878 = vmatprep.subr.bf16.mxu0 0
        %879 = vmatpush1.bf16.msra.mxu0 0
        %880 = vmatprep.subr.bf16.mxu0 0
        %881 = vmatpush1.bf16.msra.mxu0 0
        %882 = vmatprep.subr.bf16.mxu0 0
        %883 = vmatpush1.bf16.msra.mxu0 0
        %884 = vmatprep.mubr.bf16.mxu0 0
        %885 = vmatmul.mubr.bf16.gmra.mrb[0].mxu0 %v838
        %v886 = vpop.f32.mrb[0].mxu0
        %v887 = vadd.f32 0.0, %v886
        %v888 = vpop.f32.mrb[0].mxu0
        %v889 = vpop.f32.mrb[0].mxu0
        %v890 = vadd.f32 0.0, %v889
        %v891 = vpop.f32.mrb[0].mxu0
        %892 = vmatprep.mubr.bf16.mxu0 0
        %893 = vmatmul.mubr.bf16.gmra.mrb[0].mxu0 %v841
        %v894 = vpop.f32.mrb[0].mxu0
        %v895 = vadd.f32 0.0, %v894
        %v896 = vpop.f32.mrb[0].mxu0
        %v897 = vpop.f32.mrb[0].mxu0
        %v898 = vadd.f32 0.0, %v897
        %v899 = vpop.f32.mrb[0].mxu0
        %900 = vmatprep.mubr.bf16.mxu0 0
        %901 = vmatmul.mubr.bf16.gmra.mrb[0].mxu0 %v844
        %v902 = vpop.f32.mrb[0].mxu0
        %v903 = vadd.f32 0.0, %v902
        %v904 = vpop.f32.mrb[0].mxu0
        %v905 = vpop.f32.mrb[0].mxu0
        %v906 = vadd.f32 0.0, %v905
        %v907 = vpop.f32.mrb[0].mxu0
        %908 = vmatprep.mubr.bf16.mxu0 0
        %909 = vmatmul.mubr.bf16.gmra.mrb[0].mxu0 %v847
        %v910 = vpop.f32.mrb[0].mxu0
        %v911 = vadd.f32 0.0, %v910
        %v912 = vpop.f32.mrb[0].mxu0
        %v913 = vpop.f32.mrb[0].mxu0
        %v914 = vadd.f32 0.0, %v913
        %v915 = vpop.f32.mrb[0].mxu0
        %916 = vdwg.mxu0
        %v917 = vadd.f32 %v710, %v887
        %v918 = vadd.f32 %v713, %v890
        %v919 = vadd.f32 %v718, %v895
        %v920 = vadd.f32 %v721, %v898
        %v921 = vadd.f32 %v726, %v903
        %v922 = vadd.f32 %v729, %v906
        %v923 = vadd.f32 %v734, %v911
        %v924 = vadd.f32 %v737, %v914
        %v925 = vld [vmem:[%s345] sm:$0xf]
        %v926 = vld [vmem:[%s345 + $0x8] sm:$0xf]
        %v927 = vld [vmem:[%s345 + $0x10] sm:$0xf]
        %v928 = vld [vmem:[%s345 + $0x18] sm:$0xf]
        %v929 = vld [vmem:[%s345 + $0x20] sm:$0xf]
        %v930 = vld [vmem:[%s345 + $0x28] sm:$0xf]
        %v931 = vld [vmem:[%s345 + $0x30] sm:$0xf]
        %v932 = vld [vmem:[%s345 + $0x38] sm:$0xf]
        %s933 = scalar_lea.vmem %s1, 12
        %v934 = vld [vmem:[%s933] sm:$0xf]
        %v943 = vunpack.c.l.b16 %v925
        %v944 = vunpack.c.l.b16 %v926
        %v945 = vunpack.c.l.b16 %v927
        %v946 = vunpack.c.l.b16 %v928
        %v947 = vunpack.c.l.b16 %v929
        %v948 = vunpack.c.l.b16 %v930
        %v949 = vunpack.c.l.b16 %v931
        %v950 = vunpack.c.l.b16 %v932
        %v951 = vpack.c.b16 %v944, %v943
        %v952 = vpack.c.b16 %v946, %v945
        %v953 = vpack.c.b16 %v948, %v947
        %v954 = vpack.c.b16 %v950, %v949
        %v956 = vsel %vm195, %v951, 0
        %v959 = vsel %vm195, %v952, 0
        %v962 = vsel %vm195, %v953, 0
        %v965 = vsel %vm195, %v954, 0
        %v968 = vsel %vm571, %v934, 0
        %970 = vmatprep.subr.bf16.mxu0 0
        %971 = vmatpush1.bf16.msra.mxu0 %v968
        %972 = vmatprep.subr.bf16.mxu0 0
        %973 = vmatpush1.bf16.msra.mxu0 0
        %974 = vmatprep.subr.bf16.mxu0 0
        %975 = vmatpush1.bf16.msra.mxu0 0
        %976 = vmatprep.subr.bf16.mxu0 0
        %977 = vmatpush1.bf16.msra.mxu0 0
        %978 = vmatprep.subr.bf16.mxu0 0
        %979 = vmatpush1.bf16.msra.mxu0 0
        %980 = vmatprep.subr.bf16.mxu0 0
        %981 = vmatpush1.bf16.msra.mxu0 0
        %982 = vmatprep.subr.bf16.mxu0 0
        %983 = vmatpush1.bf16.msra.mxu0 0
        %984 = vmatprep.subr.bf16.mxu0 0
        %985 = vmatpush1.bf16.msra.mxu0 0
        %986 = vmatprep.subr.bf16.mxu0 0
        %987 = vmatpush1.bf16.msra.mxu0 0
        %988 = vmatprep.subr.bf16.mxu0 0
        %989 = vmatpush1.bf16.msra.mxu0 0
        %990 = vmatprep.subr.bf16.mxu0 0
        %991 = vmatpush1.bf16.msra.mxu0 0
        %992 = vmatprep.subr.bf16.mxu0 0
        %993 = vmatpush1.bf16.msra.mxu0 0
        %994 = vmatprep.subr.bf16.mxu0 0
        %995 = vmatpush1.bf16.msra.mxu0 0
        %996 = vmatprep.subr.bf16.mxu0 0
        %997 = vmatpush1.bf16.msra.mxu0 0
        %998 = vmatprep.subr.bf16.mxu0 0
        %999 = vmatpush1.bf16.msra.mxu0 0
        %1000 = vmatprep.subr.bf16.mxu0 0
        %1001 = vmatpush1.bf16.msra.mxu0 0
        %1002 = vmatprep.mubr.bf16.mxu0 0
        %1003 = vmatmul.mubr.bf16.gmra.mrb[0].mxu0 %v956
        %v1004 = vpop.f32.mrb[0].mxu0
        %v1005 = vadd.f32 0.0, %v1004
        %v1006 = vpop.f32.mrb[0].mxu0
        %v1007 = vpop.f32.mrb[0].mxu0
        %v1008 = vadd.f32 0.0, %v1007
        %v1009 = vpop.f32.mrb[0].mxu0
        %1010 = vmatprep.mubr.bf16.mxu0 0
        %1011 = vmatmul.mubr.bf16.gmra.mrb[0].mxu0 %v959
        %v1012 = vpop.f32.mrb[0].mxu0
        %v1013 = vadd.f32 0.0, %v1012
        %v1014 = vpop.f32.mrb[0].mxu0
        %v1015 = vpop.f32.mrb[0].mxu0
        %v1016 = vadd.f32 0.0, %v1015
        %v1017 = vpop.f32.mrb[0].mxu0
        %1018 = vmatprep.mubr.bf16.mxu0 0
        %1019 = vmatmul.mubr.bf16.gmra.mrb[0].mxu0 %v962
        %v1020 = vpop.f32.mrb[0].mxu0
        %v1021 = vadd.f32 0.0, %v1020
        %v1022 = vpop.f32.mrb[0].mxu0
        %v1023 = vpop.f32.mrb[0].mxu0
        %v1024 = vadd.f32 0.0, %v1023
        %v1025 = vpop.f32.mrb[0].mxu0
        %1026 = vmatprep.mubr.bf16.mxu0 0
        %1027 = vmatmul.mubr.bf16.gmra.mrb[0].mxu0 %v965
        %v1028 = vpop.f32.mrb[0].mxu0
        %v1029 = vadd.f32 0.0, %v1028
        %v1030 = vpop.f32.mrb[0].mxu0
        %v1031 = vpop.f32.mrb[0].mxu0
        %v1032 = vadd.f32 0.0, %v1031
        %v1033 = vpop.f32.mrb[0].mxu0
        %1034 = vdwg.mxu0
        %v1035 = vadd.f32 %v917, %v1005
        %v1036 = vadd.f32 %v918, %v1008
        %v1037 = vadd.f32 %v919, %v1013
        %v1038 = vadd.f32 %v920, %v1016
        %v1039 = vadd.f32 %v921, %v1021
        %v1040 = vadd.f32 %v922, %v1024
        %v1041 = vadd.f32 %v923, %v1029
        %v1042 = vadd.f32 %v924, %v1032
        %v1043 = vld [vmem:[%s345] sm:$0x1f]
        %v1044 = vld [vmem:[%s345 + $0x8] sm:$0x1f]
        %v1045 = vld [vmem:[%s345 + $0x10] sm:$0x1f]
        %v1046 = vld [vmem:[%s345 + $0x18] sm:$0x1f]
        %v1047 = vld [vmem:[%s345 + $0x20] sm:$0x1f]
        %v1048 = vld [vmem:[%s345 + $0x28] sm:$0x1f]
        %v1049 = vld [vmem:[%s345 + $0x30] sm:$0x1f]
        %v1050 = vld [vmem:[%s345 + $0x38] sm:$0x1f]
        %v1059 = vunpack.c.l.b16 %v1043
        %v1060 = vunpack.c.h.b16 %v1043
        %v1061 = vunpack.c.l.b16 %v1044
        %v1062 = vunpack.c.h.b16 %v1044
        %v1063 = vunpack.c.l.b16 %v1045
        %v1064 = vunpack.c.h.b16 %v1045
        %v1065 = vunpack.c.l.b16 %v1046
        %v1066 = vunpack.c.h.b16 %v1046
        %v1067 = vunpack.c.l.b16 %v1047
        %v1068 = vunpack.c.h.b16 %v1047
        %v1069 = vunpack.c.l.b16 %v1048
        %v1070 = vunpack.c.h.b16 %v1048
        %v1071 = vunpack.c.l.b16 %v1049
        %v1072 = vunpack.c.h.b16 %v1049
        %v1073 = vunpack.c.l.b16 %v1050
        %v1074 = vunpack.c.h.b16 %v1050
        %v1075 = vpack.c.b16 %v1059, %v1059
        %v1076 = vpack.c.b16 %v1060, %v1060
        %v1077 = vpack.c.b16 %v1061, %v1061
        %v1078 = vpack.c.b16 %v1062, %v1062
        %v1079 = vpack.c.b16 %v1063, %v1063
        %v1080 = vpack.c.b16 %v1064, %v1064
        %v1081 = vpack.c.b16 %v1065, %v1065
        %v1082 = vpack.c.b16 %v1066, %v1066
        %v1083 = vpack.c.b16 %v1067, %v1067
        %v1084 = vpack.c.b16 %v1068, %v1068
        %v1085 = vpack.c.b16 %v1069, %v1069
        %v1086 = vpack.c.b16 %v1070, %v1070
        %v1087 = vpack.c.b16 %v1071, %v1071
        %v1088 = vpack.c.b16 %v1072, %v1072
        %v1089 = vpack.c.b16 %v1073, %v1073
        %v1090 = vpack.c.b16 %v1074, %v1074
        %v1092 = vshrl.u32 %v1075, 16
        %v1094 = vrot.slane %v1092, 4
        %v1095 = vshll.u32 %v1075, 16
        %v1097 = vrot.slane %v1095, 5
        %v1098 = vor.u32 %v1094, %v1097
        %v1099 = vrot.slane %v1098, 4
        %v1101 = vshll.u32 %v1076, 16
        %v1103 = vrot.slane %v1101, 5
        %v1104 = vsel %vm432, %v1099, %v1103
        %v1106 = vshrl.u32 %v1077, 16
        %v1108 = vrot.slane %v1106, 4
        %v1109 = vshll.u32 %v1077, 16
        %v1111 = vrot.slane %v1109, 5
        %v1112 = vor.u32 %v1108, %v1111
        %v1113 = vrot.slane %v1112, 4
        %v1115 = vshll.u32 %v1078, 16
        %v1117 = vrot.slane %v1115, 5
        %v1118 = vsel %vm432, %v1113, %v1117
        %v1120 = vshrl.u32 %v1079, 16
        %v1122 = vrot.slane %v1120, 4
        %v1123 = vshll.u32 %v1079, 16
        %v1125 = vrot.slane %v1123, 5
        %v1126 = vor.u32 %v1122, %v1125
        %v1127 = vrot.slane %v1126, 4
        %v1129 = vshll.u32 %v1080, 16
        %v1131 = vrot.slane %v1129, 5
        %v1132 = vsel %vm432, %v1127, %v1131
        %v1134 = vshrl.u32 %v1081, 16
        %v1136 = vrot.slane %v1134, 4
        %v1137 = vshll.u32 %v1081, 16
        %v1139 = vrot.slane %v1137, 5
        %v1140 = vor.u32 %v1136, %v1139
        %v1141 = vrot.slane %v1140, 4
        %v1143 = vshll.u32 %v1082, 16
        %v1145 = vrot.slane %v1143, 5
        %v1146 = vsel %vm432, %v1141, %v1145
        %v1148 = vshrl.u32 %v1083, 16
        %v1150 = vrot.slane %v1148, 4
        %v1151 = vshll.u32 %v1083, 16
        %v1153 = vrot.slane %v1151, 5
        %v1154 = vor.u32 %v1150, %v1153
        %v1155 = vrot.slane %v1154, 4
        %v1157 = vshll.u32 %v1084, 16
        %v1159 = vrot.slane %v1157, 5
        %v1160 = vsel %vm432, %v1155, %v1159
        %v1162 = vshrl.u32 %v1085, 16
        %v1164 = vrot.slane %v1162, 4
        %v1165 = vshll.u32 %v1085, 16
        %v1167 = vrot.slane %v1165, 5
        %v1168 = vor.u32 %v1164, %v1167
        %v1169 = vrot.slane %v1168, 4
        %v1171 = vshll.u32 %v1086, 16
        %v1173 = vrot.slane %v1171, 5
        %v1174 = vsel %vm432, %v1169, %v1173
        %v1176 = vshrl.u32 %v1087, 16
        %v1178 = vrot.slane %v1176, 4
        %v1179 = vshll.u32 %v1087, 16
        %v1181 = vrot.slane %v1179, 5
        %v1182 = vor.u32 %v1178, %v1181
        %v1183 = vrot.slane %v1182, 4
        %v1185 = vshll.u32 %v1088, 16
        %v1187 = vrot.slane %v1185, 5
        %v1188 = vsel %vm432, %v1183, %v1187
        %v1190 = vshrl.u32 %v1089, 16
        %v1192 = vrot.slane %v1190, 4
        %v1193 = vshll.u32 %v1089, 16
        %v1195 = vrot.slane %v1193, 5
        %v1196 = vor.u32 %v1192, %v1195
        %v1197 = vrot.slane %v1196, 4
        %v1199 = vshll.u32 %v1090, 16
        %v1201 = vrot.slane %v1199, 5
        %v1202 = vsel %vm432, %v1197, %v1201
        %s1203 = scalar_lea.vmem %s1, 16
        %v1204 = vld [vmem:[%s1203] sm:$0xf]
        %v1205 = vunpack.c.l.b16 %v1104
        %v1206 = vunpack.c.l.b16 %v1118
        %v1207 = vunpack.c.l.b16 %v1132
        %v1208 = vunpack.c.l.b16 %v1146
        %v1209 = vunpack.c.l.b16 %v1160
        %v1210 = vunpack.c.l.b16 %v1174
        %v1211 = vunpack.c.l.b16 %v1188
        %v1212 = vunpack.c.l.b16 %v1202
        %v1213 = vpack.c.b16 %v1206, %v1205
        %v1214 = vpack.c.b16 %v1208, %v1207
        %v1215 = vpack.c.b16 %v1210, %v1209
        %v1216 = vpack.c.b16 %v1212, %v1211
        %v1218 = vsel %vm195, %v1213, 0
        %v1221 = vsel %vm195, %v1214, 0
        %v1224 = vsel %vm195, %v1215, 0
        %v1227 = vsel %vm195, %v1216, 0
        %v1230 = vsel %vm571, %v1204, 0
        %1232 = vmatprep.subr.bf16.mxu0 0
        %1233 = vmatpush1.bf16.msra.mxu0 %v1230
        %1234 = vmatprep.subr.bf16.mxu0 0
        %1235 = vmatpush1.bf16.msra.mxu0 0
        %1236 = vmatprep.subr.bf16.mxu0 0
        %1237 = vmatpush1.bf16.msra.mxu0 0
        %1238 = vmatprep.subr.bf16.mxu0 0
        %1239 = vmatpush1.bf16.msra.mxu0 0
        %1240 = vmatprep.subr.bf16.mxu0 0
        %1241 = vmatpush1.bf16.msra.mxu0 0
        %1242 = vmatprep.subr.bf16.mxu0 0
        %1243 = vmatpush1.bf16.msra.mxu0 0
        %1244 = vmatprep.subr.bf16.mxu0 0
        %1245 = vmatpush1.bf16.msra.mxu0 0
        %1246 = vmatprep.subr.bf16.mxu0 0
        %1247 = vmatpush1.bf16.msra.mxu0 0
        %1248 = vmatprep.subr.bf16.mxu0 0
        %1249 = vmatpush1.bf16.msra.mxu0 0
        %1250 = vmatprep.subr.bf16.mxu0 0
        %1251 = vmatpush1.bf16.msra.mxu0 0
        %1252 = vmatprep.subr.bf16.mxu0 0
        %1253 = vmatpush1.bf16.msra.mxu0 0
        %1254 = vmatprep.subr.bf16.mxu0 0
        %1255 = vmatpush1.bf16.msra.mxu0 0
        %1256 = vmatprep.subr.bf16.mxu0 0
        %1257 = vmatpush1.bf16.msra.mxu0 0
        %1258 = vmatprep.subr.bf16.mxu0 0
        %1259 = vmatpush1.bf16.msra.mxu0 0
        %1260 = vmatprep.subr.bf16.mxu0 0
        %1261 = vmatpush1.bf16.msra.mxu0 0
        %1262 = vmatprep.subr.bf16.mxu0 0
        %1263 = vmatpush1.bf16.msra.mxu0 0
        %1264 = vmatprep.mubr.bf16.mxu0 0
        %1265 = vmatmul.mubr.bf16.gmra.mrb[0].mxu0 %v1218
        %v1266 = vpop.f32.mrb[0].mxu0
        %v1267 = vadd.f32 0.0, %v1266
        %v1268 = vpop.f32.mrb[0].mxu0
        %v1269 = vpop.f32.mrb[0].mxu0
        %v1270 = vadd.f32 0.0, %v1269
        %v1271 = vpop.f32.mrb[0].mxu0
        %1272 = vmatprep.mubr.bf16.mxu0 0
        %1273 = vmatmul.mubr.bf16.gmra.mrb[0].mxu0 %v1221
        %v1274 = vpop.f32.mrb[0].mxu0
        %v1275 = vadd.f32 0.0, %v1274
        %v1276 = vpop.f32.mrb[0].mxu0
        %v1277 = vpop.f32.mrb[0].mxu0
        %v1278 = vadd.f32 0.0, %v1277
        %v1279 = vpop.f32.mrb[0].mxu0
        %1280 = vmatprep.mubr.bf16.mxu0 0
        %1281 = vmatmul.mubr.bf16.gmra.mrb[0].mxu0 %v1224
        %v1282 = vpop.f32.mrb[0].mxu0
        %v1283 = vadd.f32 0.0, %v1282
        %v1284 = vpop.f32.mrb[0].mxu0
        %v1285 = vpop.f32.mrb[0].mxu0
        %v1286 = vadd.f32 0.0, %v1285
        %v1287 = vpop.f32.mrb[0].mxu0
        %1288 = vmatprep.mubr.bf16.mxu0 0
        %1289 = vmatmul.mubr.bf16.gmra.mrb[0].mxu0 %v1227
        %v1290 = vpop.f32.mrb[0].mxu0
        %v1291 = vadd.f32 0.0, %v1290
        %v1292 = vpop.f32.mrb[0].mxu0
        %v1293 = vpop.f32.mrb[0].mxu0
        %v1294 = vadd.f32 0.0, %v1293
        %v1295 = vpop.f32.mrb[0].mxu0
        %1296 = vdwg.mxu0
        %v1297 = vadd.f32 %v1035, %v1267
        %v1298 = vadd.f32 %v1036, %v1270
        %v1299 = vadd.f32 %v1037, %v1275
        %v1300 = vadd.f32 %v1038, %v1278
        %v1301 = vadd.f32 %v1039, %v1283
        %v1302 = vadd.f32 %v1040, %v1286
        %v1303 = vadd.f32 %v1041, %v1291
        %v1304 = vadd.f32 %v1042, %v1294
        %v1305 = vld [vmem:[%s345] sm:$0x1e]
        %v1306 = vld [vmem:[%s345 + $0x8] sm:$0x1e]
        %v1307 = vld [vmem:[%s345 + $0x10] sm:$0x1e]
        %v1308 = vld [vmem:[%s345 + $0x18] sm:$0x1e]
        %v1309 = vld [vmem:[%s345 + $0x20] sm:$0x1e]
        %v1310 = vld [vmem:[%s345 + $0x28] sm:$0x1e]
        %v1311 = vld [vmem:[%s345 + $0x30] sm:$0x1e]
        %v1312 = vld [vmem:[%s345 + $0x38] sm:$0x1e]
        %v1321 = vunpack.c.l.b16 %v1305
        %v1322 = vunpack.c.h.b16 %v1305
        %v1323 = vunpack.c.l.b16 %v1306
        %v1324 = vunpack.c.h.b16 %v1306
        %v1325 = vunpack.c.l.b16 %v1307
        %v1326 = vunpack.c.h.b16 %v1307
        %v1327 = vunpack.c.l.b16 %v1308
        %v1328 = vunpack.c.h.b16 %v1308
        %v1329 = vunpack.c.l.b16 %v1309
        %v1330 = vunpack.c.h.b16 %v1309
        %v1331 = vunpack.c.l.b16 %v1310
        %v1332 = vunpack.c.h.b16 %v1310
        %v1333 = vunpack.c.l.b16 %v1311
        %v1334 = vunpack.c.h.b16 %v1311
        %v1335 = vunpack.c.l.b16 %v1312
        %v1336 = vunpack.c.h.b16 %v1312
        %v1337 = vpack.c.b16 %v1321, %v1321
        %v1338 = vpack.c.b16 %v1322, %v1322
        %v1339 = vpack.c.b16 %v1323, %v1323
        %v1340 = vpack.c.b16 %v1324, %v1324
        %v1341 = vpack.c.b16 %v1325, %v1325
        %v1342 = vpack.c.b16 %v1326, %v1326
        %v1343 = vpack.c.b16 %v1327, %v1327
        %v1344 = vpack.c.b16 %v1328, %v1328
        %v1345 = vpack.c.b16 %v1329, %v1329
        %v1346 = vpack.c.b16 %v1330, %v1330
        %v1347 = vpack.c.b16 %v1331, %v1331
        %v1348 = vpack.c.b16 %v1332, %v1332
        %v1349 = vpack.c.b16 %v1333, %v1333
        %v1350 = vpack.c.b16 %v1334, %v1334
        %v1351 = vpack.c.b16 %v1335, %v1335
        %v1352 = vpack.c.b16 %v1336, %v1336
        %v1353 = vrot.slane %v1337, 5
        %v1354 = vrot.slane %v1353, 4
        %v1355 = vrot.slane %v1338, 5
        %v1356 = vsel %vm790, %v1354, %v1355
        %v1357 = vrot.slane %v1339, 5
        %v1358 = vrot.slane %v1357, 4
        %v1359 = vrot.slane %v1340, 5
        %v1360 = vsel %vm790, %v1358, %v1359
        %v1361 = vrot.slane %v1341, 5
        %v1362 = vrot.slane %v1361, 4
        %v1363 = vrot.slane %v1342, 5
        %v1364 = vsel %vm790, %v1362, %v1363
        %v1365 = vrot.slane %v1343, 5
        %v1366 = vrot.slane %v1365, 4
        %v1367 = vrot.slane %v1344, 5
        %v1368 = vsel %vm790, %v1366, %v1367
        %v1369 = vrot.slane %v1345, 5
        %v1370 = vrot.slane %v1369, 4
        %v1371 = vrot.slane %v1346, 5
        %v1372 = vsel %vm790, %v1370, %v1371
        %v1373 = vrot.slane %v1347, 5
        %v1374 = vrot.slane %v1373, 4
        %v1375 = vrot.slane %v1348, 5
        %v1376 = vsel %vm790, %v1374, %v1375
        %v1377 = vrot.slane %v1349, 5
        %v1378 = vrot.slane %v1377, 4
        %v1379 = vrot.slane %v1350, 5
        %v1380 = vsel %vm790, %v1378, %v1379
        %v1381 = vrot.slane %v1351, 5
        %v1382 = vrot.slane %v1381, 4
        %v1383 = vrot.slane %v1352, 5
        %v1384 = vsel %vm790, %v1382, %v1383
        %s1385 = scalar_lea.vmem %s1, 20
        %v1386 = vld [vmem:[%s1385] sm:$0xf]
        %v1387 = vunpack.c.l.b16 %v1356
        %v1388 = vunpack.c.l.b16 %v1360
        %v1389 = vunpack.c.l.b16 %v1364
        %v1390 = vunpack.c.l.b16 %v1368
        %v1391 = vunpack.c.l.b16 %v1372
        %v1392 = vunpack.c.l.b16 %v1376
        %v1393 = vunpack.c.l.b16 %v1380
        %v1394 = vunpack.c.l.b16 %v1384
        %v1395 = vpack.c.b16 %v1388, %v1387
        %v1396 = vpack.c.b16 %v1390, %v1389
        %v1397 = vpack.c.b16 %v1392, %v1391
        %v1398 = vpack.c.b16 %v1394, %v1393
        %v1400 = vsel %vm195, %v1395, 0
        %v1403 = vsel %vm195, %v1396, 0
        %v1406 = vsel %vm195, %v1397, 0
        %v1409 = vsel %vm195, %v1398, 0
        %v1412 = vsel %vm571, %v1386, 0
        %1414 = vmatprep.subr.bf16.mxu0 0
        %1415 = vmatpush1.bf16.msra.mxu0 %v1412
        %1416 = vmatprep.subr.bf16.mxu0 0
        %1417 = vmatpush1.bf16.msra.mxu0 0
        %1418 = vmatprep.subr.bf16.mxu0 0
        %1419 = vmatpush1.bf16.msra.mxu0 0
        %1420 = vmatprep.subr.bf16.mxu0 0
        %1421 = vmatpush1.bf16.msra.mxu0 0
        %1422 = vmatprep.subr.bf16.mxu0 0
        %1423 = vmatpush1.bf16.msra.mxu0 0
        %1424 = vmatprep.subr.bf16.mxu0 0
        %1425 = vmatpush1.bf16.msra.mxu0 0
        %1426 = vmatprep.subr.bf16.mxu0 0
        %1427 = vmatpush1.bf16.msra.mxu0 0
        %1428 = vmatprep.subr.bf16.mxu0 0
        %1429 = vmatpush1.bf16.msra.mxu0 0
        %1430 = vmatprep.subr.bf16.mxu0 0
        %1431 = vmatpush1.bf16.msra.mxu0 0
        %1432 = vmatprep.subr.bf16.mxu0 0
        %1433 = vmatpush1.bf16.msra.mxu0 0
        %1434 = vmatprep.subr.bf16.mxu0 0
        %1435 = vmatpush1.bf16.msra.mxu0 0
        %1436 = vmatprep.subr.bf16.mxu0 0
        %1437 = vmatpush1.bf16.msra.mxu0 0
        %1438 = vmatprep.subr.bf16.mxu0 0
        %1439 = vmatpush1.bf16.msra.mxu0 0
        %1440 = vmatprep.subr.bf16.mxu0 0
        %1441 = vmatpush1.bf16.msra.mxu0 0
        %1442 = vmatprep.subr.bf16.mxu0 0
        %1443 = vmatpush1.bf16.msra.mxu0 0
        %1444 = vmatprep.subr.bf16.mxu0 0
        %1445 = vmatpush1.bf16.msra.mxu0 0
        %1446 = vmatprep.mubr.bf16.mxu0 0
        %1447 = vmatmul.mubr.bf16.gmra.mrb[0].mxu0 %v1400
        %v1448 = vpop.f32.mrb[0].mxu0
        %v1449 = vadd.f32 0.0, %v1448
        %v1450 = vpop.f32.mrb[0].mxu0
        %v1451 = vpop.f32.mrb[0].mxu0
        %v1452 = vadd.f32 0.0, %v1451
        %v1453 = vpop.f32.mrb[0].mxu0
        %1454 = vmatprep.mubr.bf16.mxu0 0
        %1455 = vmatmul.mubr.bf16.gmra.mrb[0].mxu0 %v1403
        %v1456 = vpop.f32.mrb[0].mxu0
        %v1457 = vadd.f32 0.0, %v1456
        %v1458 = vpop.f32.mrb[0].mxu0
        %v1459 = vpop.f32.mrb[0].mxu0
        %v1460 = vadd.f32 0.0, %v1459
        %v1461 = vpop.f32.mrb[0].mxu0
        %1462 = vmatprep.mubr.bf16.mxu0 0
        %1463 = vmatmul.mubr.bf16.gmra.mrb[0].mxu0 %v1406
        %v1464 = vpop.f32.mrb[0].mxu0
        %v1465 = vadd.f32 0.0, %v1464
        %v1466 = vpop.f32.mrb[0].mxu0
        %v1467 = vpop.f32.mrb[0].mxu0
        %v1468 = vadd.f32 0.0, %v1467
        %v1469 = vpop.f32.mrb[0].mxu0
        %1470 = vmatprep.mubr.bf16.mxu0 0
        %1471 = vmatmul.mubr.bf16.gmra.mrb[0].mxu0 %v1409
        %v1472 = vpop.f32.mrb[0].mxu0
        %v1473 = vadd.f32 0.0, %v1472
        %v1474 = vpop.f32.mrb[0].mxu0
        %v1475 = vpop.f32.mrb[0].mxu0
        %v1476 = vadd.f32 0.0, %v1475
        %v1477 = vpop.f32.mrb[0].mxu0
        %1478 = vdwg.mxu0
        %v1479 = vadd.f32 %v1297, %v1449
        %v1480 = vadd.f32 %v1298, %v1452
        %v1481 = vadd.f32 %v1299, %v1457
        %v1482 = vadd.f32 %v1300, %v1460
        %v1483 = vadd.f32 %v1301, %v1465
        %v1484 = vadd.f32 %v1302, %v1468
        %v1485 = vadd.f32 %v1303, %v1473
        %v1486 = vadd.f32 %v1304, %v1476
        %v1487 = vld [vmem:[%s2] sm:$0x1]
        %v1489 = vlaneseq
        %v1490 = vshrl.u32 %v1489, 7
        %v1491 = vsub.s32 0, %v1490
        %v1492 = vrot.slane %v1487, %v1491
        %v1494 = vadd.f32 %v1479, %v1492
        %v1495 = vadd.f32 %v1480, %v1492
        %v1496 = vadd.f32 %v1481, %v1492
        %v1497 = vadd.f32 %v1482, %v1492
        %v1498 = vadd.f32 %v1483, %v1492
        %v1499 = vadd.f32 %v1484, %v1492
        %v1500 = vadd.f32 %v1485, %v1492
        %v1501 = vadd.f32 %v1486, %v1492
        %v1502 = vpack.c.bf16 %v1494, %v1494
        %v1503 = vpack.c.bf16 %v1495, %v1495
        %v1504 = vpack.c.bf16 %v1496, %v1496
        %v1505 = vpack.c.bf16 %v1497, %v1497
        %v1506 = vpack.c.bf16 %v1498, %v1498
        %v1507 = vpack.c.bf16 %v1499, %v1499
        %v1508 = vpack.c.bf16 %v1500, %v1500
        %v1509 = vpack.c.bf16 %v1501, %v1501
        %vm1510 = vcmask 60416
        %1511 = vst.msk [vmem:[%s192] sm:$0xf] %vm1510, %v1502
        %1512 = vst.msk [vmem:[%s192 + $0x8] sm:$0xf] %vm1510, %v1503
        %1513 = vst.msk [vmem:[%s192 + $0x10] sm:$0xf] %vm1510, %v1504
        %1514 = vst.msk [vmem:[%s192 + $0x18] sm:$0xf] %vm1510, %v1505
        %1515 = vst.msk [vmem:[%s192 + $0x20] sm:$0xf] %vm1510, %v1506
        %1516 = vst.msk [vmem:[%s192 + $0x28] sm:$0xf] %vm1510, %v1507
        %1517 = vst.msk [vmem:[%s192 + $0x30] sm:$0xf] %vm1510, %v1508
        %1518 = vst.msk [vmem:[%s192 + $0x38] sm:$0xf] %vm1510, %v1509
        %v1519 = vld [vmem:[%s345] sm:$0xf]
        %v1520 = vld [vmem:[%s345 + $0x8] sm:$0xf]
        %v1521 = vld [vmem:[%s345 + $0x10] sm:$0xf]
        %v1522 = vld [vmem:[%s345 + $0x18] sm:$0xf]
        %v1523 = vld [vmem:[%s345 + $0x20] sm:$0xf]
        %v1524 = vld [vmem:[%s345 + $0x28] sm:$0xf]
        %v1525 = vld [vmem:[%s345 + $0x30] sm:$0xf]
        %v1526 = vld [vmem:[%s345 + $0x38] sm:$0xf]
        %s1527 = scalar_lea.vmem %s1, 24
        %v1528 = vld [vmem:[%s1527] sm:$0xf]
        %v1529 = vld [vmem:[%s345] sm:$0x1f]
        %v1530 = vld [vmem:[%s345 + $0x8] sm:$0x1f]
        %v1531 = vld [vmem:[%s345 + $0x10] sm:$0x1f]
        %v1532 = vld [vmem:[%s345 + $0x18] sm:$0x1f]
        %v1533 = vld [vmem:[%s345 + $0x20] sm:$0x1f]
        %v1534 = vld [vmem:[%s345 + $0x28] sm:$0x1f]
        %v1535 = vld [vmem:[%s345 + $0x30] sm:$0x1f]
        %v1536 = vld [vmem:[%s345 + $0x38] sm:$0x1f]
        %v1545 = vunpack.c.l.b16 %v1529
        %v1546 = vunpack.c.h.b16 %v1529
        %v1547 = vunpack.c.l.b16 %v1530
        %v1548 = vunpack.c.h.b16 %v1530
        %v1549 = vunpack.c.l.b16 %v1531
        %v1550 = vunpack.c.h.b16 %v1531
        %v1551 = vunpack.c.l.b16 %v1532
        %v1552 = vunpack.c.h.b16 %v1532
        %v1553 = vunpack.c.l.b16 %v1533
        %v1554 = vunpack.c.h.b16 %v1533
        %v1555 = vunpack.c.l.b16 %v1534
        %v1556 = vunpack.c.h.b16 %v1534
        %v1557 = vunpack.c.l.b16 %v1535
        %v1558 = vunpack.c.h.b16 %v1535
        %v1559 = vunpack.c.l.b16 %v1536
        %v1560 = vunpack.c.h.b16 %v1536
        %v1561 = vpack.c.b16 %v1545, %v1545
        %v1562 = vpack.c.b16 %v1546, %v1546
        %v1563 = vpack.c.b16 %v1547, %v1547
        %v1564 = vpack.c.b16 %v1548, %v1548
        %v1565 = vpack.c.b16 %v1549, %v1549
        %v1566 = vpack.c.b16 %v1550, %v1550
        %v1567 = vpack.c.b16 %v1551, %v1551
        %v1568 = vpack.c.b16 %v1552, %v1552
        %v1569 = vpack.c.b16 %v1553, %v1553
        %v1570 = vpack.c.b16 %v1554, %v1554
        %v1571 = vpack.c.b16 %v1555, %v1555
        %v1572 = vpack.c.b16 %v1556, %v1556
        %v1573 = vpack.c.b16 %v1557, %v1557
        %v1574 = vpack.c.b16 %v1558, %v1558
        %v1575 = vpack.c.b16 %v1559, %v1559
        %v1576 = vpack.c.b16 %v1560, %v1560
        %v1578 = vshrl.u32 %v1561, 16
        %v1580 = vrot.slane %v1578, 4
        %v1581 = vshll.u32 %v1561, 16
        %v1583 = vrot.slane %v1581, 5
        %v1584 = vor.u32 %v1580, %v1583
        %v1585 = vrot.slane %v1584, 4
        %v1587 = vshll.u32 %v1562, 16
        %v1589 = vrot.slane %v1587, 5
        %v1590 = vsel %vm432, %v1585, %v1589
        %v1592 = vshrl.u32 %v1563, 16
        %v1594 = vrot.slane %v1592, 4
        %v1595 = vshll.u32 %v1563, 16
        %v1597 = vrot.slane %v1595, 5
        %v1598 = vor.u32 %v1594, %v1597
        %v1599 = vrot.slane %v1598, 4
        %v1601 = vshll.u32 %v1564, 16
        %v1603 = vrot.slane %v1601, 5
        %v1604 = vsel %vm432, %v1599, %v1603
        %v1606 = vshrl.u32 %v1565, 16
        %v1608 = vrot.slane %v1606, 4
        %v1609 = vshll.u32 %v1565, 16
        %v1611 = vrot.slane %v1609, 5
        %v1612 = vor.u32 %v1608, %v1611
        %v1613 = vrot.slane %v1612, 4
        %v1615 = vshll.u32 %v1566, 16
        %v1617 = vrot.slane %v1615, 5
        %v1618 = vsel %vm432, %v1613, %v1617
        %v1620 = vshrl.u32 %v1567, 16
        %v1622 = vrot.slane %v1620, 4
        %v1623 = vshll.u32 %v1567, 16
        %v1625 = vrot.slane %v1623, 5
        %v1626 = vor.u32 %v1622, %v1625
        %v1627 = vrot.slane %v1626, 4
        %v1629 = vshll.u32 %v1568, 16
        %v1631 = vrot.slane %v1629, 5
        %v1632 = vsel %vm432, %v1627, %v1631
        %v1634 = vshrl.u32 %v1569, 16
        %v1636 = vrot.slane %v1634, 4
        %v1637 = vshll.u32 %v1569, 16
        %v1639 = vrot.slane %v1637, 5
        %v1640 = vor.u32 %v1636, %v1639
        %v1641 = vrot.slane %v1640, 4
        %v1643 = vshll.u32 %v1570, 16
        %v1645 = vrot.slane %v1643, 5
        %v1646 = vsel %vm432, %v1641, %v1645
        %v1648 = vshrl.u32 %v1571, 16
        %v1650 = vrot.slane %v1648, 4
        %v1651 = vshll.u32 %v1571, 16
        %v1653 = vrot.slane %v1651, 5
        %v1654 = vor.u32 %v1650, %v1653
        %v1655 = vrot.slane %v1654, 4
        %v1657 = vshll.u32 %v1572, 16
        %v1659 = vrot.slane %v1657, 5
        %v1660 = vsel %vm432, %v1655, %v1659
        %v1662 = vshrl.u32 %v1573, 16
        %v1664 = vrot.slane %v1662, 4
        %v1665 = vshll.u32 %v1573, 16
        %v1667 = vrot.slane %v1665, 5
        %v1668 = vor.u32 %v1664, %v1667
        %v1669 = vrot.slane %v1668, 4
        %v1671 = vshll.u32 %v1574, 16
        %v1673 = vrot.slane %v1671, 5
        %v1674 = vsel %vm432, %v1669, %v1673
        %v1676 = vshrl.u32 %v1575, 16
        %v1678 = vrot.slane %v1676, 4
        %v1679 = vshll.u32 %v1575, 16
        %v1681 = vrot.slane %v1679, 5
        %v1682 = vor.u32 %v1678, %v1681
        %v1683 = vrot.slane %v1682, 4
        %v1685 = vshll.u32 %v1576, 16
        %v1687 = vrot.slane %v1685, 5
        %v1688 = vsel %vm432, %v1683, %v1687
        %s1689 = scalar_lea.vmem %s1, 28
        %v1690 = vld [vmem:[%s1689] sm:$0xf]
        %v1691 = vunpack.c.l.b16 %v1590
        %v1692 = vunpack.c.l.b16 %v1604
        %v1693 = vunpack.c.l.b16 %v1618
        %v1694 = vunpack.c.l.b16 %v1632
        %v1695 = vunpack.c.l.b16 %v1646
        %v1696 = vunpack.c.l.b16 %v1660
        %v1697 = vunpack.c.l.b16 %v1674
        %v1698 = vunpack.c.l.b16 %v1688
        %v1699 = vpack.c.b16 %v1692, %v1691
        %v1700 = vpack.c.b16 %v1694, %v1693
        %v1701 = vpack.c.b16 %v1696, %v1695
        %v1702 = vpack.c.b16 %v1698, %v1697
        %v1704 = vsel %vm195, %v1699, 0
        %v1707 = vsel %vm195, %v1700, 0
        %v1710 = vsel %vm195, %v1701, 0
        %v1713 = vsel %vm195, %v1702, 0
        %v1716 = vsel %vm571, %v1690, 0
        %1718 = vmatprep.subr.bf16.mxu0 0
        %1719 = vmatpush1.bf16.msra.mxu0 %v1716
        %1720 = vmatprep.subr.bf16.mxu0 0
        %1721 = vmatpush1.bf16.msra.mxu0 0
        %1722 = vmatprep.subr.bf16.mxu0 0
        %1723 = vmatpush1.bf16.msra.mxu0 0
        %1724 = vmatprep.subr.bf16.mxu0 0
        %1725 = vmatpush1.bf16.msra.mxu0 0
        %1726 = vmatprep.subr.bf16.mxu0 0
        %1727 = vmatpush1.bf16.msra.mxu0 0
        %1728 = vmatprep.subr.bf16.mxu0 0
        %1729 = vmatpush1.bf16.msra.mxu0 0
        %1730 = vmatprep.subr.bf16.mxu0 0
        %1731 = vmatpush1.bf16.msra.mxu0 0
        %1732 = vmatprep.subr.bf16.mxu0 0
        %1733 = vmatpush1.bf16.msra.mxu0 0
        %1734 = vmatprep.subr.bf16.mxu0 0
        %1735 = vmatpush1.bf16.msra.mxu0 0
        %1736 = vmatprep.subr.bf16.mxu0 0
        %1737 = vmatpush1.bf16.msra.mxu0 0
        %1738 = vmatprep.subr.bf16.mxu0 0
        %1739 = vmatpush1.bf16.msra.mxu0 0
        %1740 = vmatprep.subr.bf16.mxu0 0
        %1741 = vmatpush1.bf16.msra.mxu0 0
        %1742 = vmatprep.subr.bf16.mxu0 0
        %1743 = vmatpush1.bf16.msra.mxu0 0
        %1744 = vmatprep.subr.bf16.mxu0 0
        %1745 = vmatpush1.bf16.msra.mxu0 0
        %1746 = vmatprep.subr.bf16.mxu0 0
        %1747 = vmatpush1.bf16.msra.mxu0 0
        %1748 = vmatprep.subr.bf16.mxu0 0
        %1749 = vmatpush1.bf16.msra.mxu0 0
        %1750 = vmatprep.mubr.bf16.mxu0 0
        %1751 = vmatmul.mubr.bf16.gmra.mrb[0].mxu0 %v1704
        %v1752 = vpop.f32.mrb[0].mxu0
        %v1753 = vadd.f32 0.0, %v1752
        %v1754 = vpop.f32.mrb[0].mxu0
        %v1755 = vpop.f32.mrb[0].mxu0
        %v1756 = vadd.f32 0.0, %v1755
        %v1757 = vpop.f32.mrb[0].mxu0
        %1758 = vmatprep.mubr.bf16.mxu0 0
        %1759 = vmatmul.mubr.bf16.gmra.mrb[0].mxu0 %v1707
        %v1760 = vpop.f32.mrb[0].mxu0
        %v1761 = vadd.f32 0.0, %v1760
        %v1762 = vpop.f32.mrb[0].mxu0
        %v1763 = vpop.f32.mrb[0].mxu0
        %v1764 = vadd.f32 0.0, %v1763
        %v1765 = vpop.f32.mrb[0].mxu0
        %1766 = vmatprep.mubr.bf16.mxu0 0
        %1767 = vmatmul.mubr.bf16.gmra.mrb[0].mxu0 %v1710
        %v1768 = vpop.f32.mrb[0].mxu0
        %v1769 = vadd.f32 0.0, %v1768
        %v1770 = vpop.f32.mrb[0].mxu0
        %v1771 = vpop.f32.mrb[0].mxu0
        %v1772 = vadd.f32 0.0, %v1771
        %v1773 = vpop.f32.mrb[0].mxu0
        %1774 = vmatprep.mubr.bf16.mxu0 0
        %1775 = vmatmul.mubr.bf16.gmra.mrb[0].mxu0 %v1713
        %v1776 = vpop.f32.mrb[0].mxu0
        %v1777 = vadd.f32 0.0, %v1776
        %v1778 = vpop.f32.mrb[0].mxu0
        %v1779 = vpop.f32.mrb[0].mxu0
        %v1780 = vadd.f32 0.0, %v1779
        %v1781 = vpop.f32.mrb[0].mxu0
        %1782 = vdwg.mxu0
        %v1791 = vunpack.c.l.b16 %v1519
        %v1792 = vunpack.c.l.b16 %v1520
        %v1793 = vunpack.c.l.b16 %v1521
        %v1794 = vunpack.c.l.b16 %v1522
        %v1795 = vunpack.c.l.b16 %v1523
        %v1796 = vunpack.c.l.b16 %v1524
        %v1797 = vunpack.c.l.b16 %v1525
        %v1798 = vunpack.c.l.b16 %v1526
        %v1799 = vpack.c.b16 %v1792, %v1791
        %v1800 = vpack.c.b16 %v1794, %v1793
        %v1801 = vpack.c.b16 %v1796, %v1795
        %v1802 = vpack.c.b16 %v1798, %v1797
        %v1804 = vsel %vm195, %v1799, 0
        %v1807 = vsel %vm195, %v1800, 0
        %v1810 = vsel %vm195, %v1801, 0
        %v1813 = vsel %vm195, %v1802, 0
        %v1816 = vsel %vm571, %v1528, 0
        %1818 = vmatprep.subr.bf16.mxu0 0
        %1819 = vmatpush1.bf16.msra.mxu0 %v1816
        %1820 = vmatprep.subr.bf16.mxu0 0
        %1821 = vmatpush1.bf16.msra.mxu0 0
        %1822 = vmatprep.subr.bf16.mxu0 0
        %1823 = vmatpush1.bf16.msra.mxu0 0
        %1824 = vmatprep.subr.bf16.mxu0 0
        %1825 = vmatpush1.bf16.msra.mxu0 0
        %1826 = vmatprep.subr.bf16.mxu0 0
        %1827 = vmatpush1.bf16.msra.mxu0 0
        %1828 = vmatprep.subr.bf16.mxu0 0
        %1829 = vmatpush1.bf16.msra.mxu0 0
        %1830 = vmatprep.subr.bf16.mxu0 0
        %1831 = vmatpush1.bf16.msra.mxu0 0
        %1832 = vmatprep.subr.bf16.mxu0 0
        %1833 = vmatpush1.bf16.msra.mxu0 0
        %1834 = vmatprep.subr.bf16.mxu0 0
        %1835 = vmatpush1.bf16.msra.mxu0 0
        %1836 = vmatprep.subr.bf16.mxu0 0
        %1837 = vmatpush1.bf16.msra.mxu0 0
        %1838 = vmatprep.subr.bf16.mxu0 0
        %1839 = vmatpush1.bf16.msra.mxu0 0
        %1840 = vmatprep.subr.bf16.mxu0 0
        %1841 = vmatpush1.bf16.msra.mxu0 0
        %1842 = vmatprep.subr.bf16.mxu0 0
        %1843 = vmatpush1.bf16.msra.mxu0 0
        %1844 = vmatprep.subr.bf16.mxu0 0
        %1845 = vmatpush1.bf16.msra.mxu0 0
        %1846 = vmatprep.subr.bf16.mxu0 0
        %1847 = vmatpush1.bf16.msra.mxu0 0
        %1848 = vmatprep.subr.bf16.mxu0 0
        %1849 = vmatpush1.bf16.msra.mxu0 0
        %1850 = vmatprep.mubr.bf16.mxu0 0
        %1851 = vmatmul.mubr.bf16.gmra.mrb[0].mxu0 %v1804
        %v1852 = vpop.f32.mrb[0].mxu0
        %v1853 = vadd.f32 %v1753, %v1852
        %v1854 = vpop.f32.mrb[0].mxu0
        %v1855 = vpop.f32.mrb[0].mxu0
        %v1856 = vadd.f32 %v1756, %v1855
        %v1857 = vpop.f32.mrb[0].mxu0
        %1858 = vmatprep.mubr.bf16.mxu0 0
        %1859 = vmatmul.mubr.bf16.gmra.mrb[0].mxu0 %v1807
        %v1860 = vpop.f32.mrb[0].mxu0
        %v1861 = vadd.f32 %v1761, %v1860
        %v1862 = vpop.f32.mrb[0].mxu0
        %v1863 = vpop.f32.mrb[0].mxu0
        %v1864 = vadd.f32 %v1764, %v1863
        %v1865 = vpop.f32.mrb[0].mxu0
        %1866 = vmatprep.mubr.bf16.mxu0 0
        %1867 = vmatmul.mubr.bf16.gmra.mrb[0].mxu0 %v1810
        %v1868 = vpop.f32.mrb[0].mxu0
        %v1869 = vadd.f32 %v1769, %v1868
        %v1870 = vpop.f32.mrb[0].mxu0
        %v1871 = vpop.f32.mrb[0].mxu0
        %v1872 = vadd.f32 %v1772, %v1871
        %v1873 = vpop.f32.mrb[0].mxu0
        %1874 = vmatprep.mubr.bf16.mxu0 0
        %1875 = vmatmul.mubr.bf16.gmra.mrb[0].mxu0 %v1813
        %v1876 = vpop.f32.mrb[0].mxu0
        %v1877 = vadd.f32 %v1777, %v1876
        %v1878 = vpop.f32.mrb[0].mxu0
        %v1879 = vpop.f32.mrb[0].mxu0
        %v1880 = vadd.f32 %v1780, %v1879
        %v1881 = vpop.f32.mrb[0].mxu0
        %1882 = vdwg.mxu0
        %v1883 = vld [vmem:[%s345] sm:$0x1e]
        %v1884 = vld [vmem:[%s345 + $0x8] sm:$0x1e]
        %v1885 = vld [vmem:[%s345 + $0x10] sm:$0x1e]
        %v1886 = vld [vmem:[%s345 + $0x18] sm:$0x1e]
        %v1887 = vld [vmem:[%s345 + $0x20] sm:$0x1e]
        %v1888 = vld [vmem:[%s345 + $0x28] sm:$0x1e]
        %v1889 = vld [vmem:[%s345 + $0x30] sm:$0x1e]
        %v1890 = vld [vmem:[%s345 + $0x38] sm:$0x1e]
        %v1899 = vunpack.c.l.b16 %v1883
        %v1900 = vunpack.c.h.b16 %v1883
        %v1901 = vunpack.c.l.b16 %v1884
        %v1902 = vunpack.c.h.b16 %v1884
        %v1903 = vunpack.c.l.b16 %v1885
        %v1904 = vunpack.c.h.b16 %v1885
        %v1905 = vunpack.c.l.b16 %v1886
        %v1906 = vunpack.c.h.b16 %v1886
        %v1907 = vunpack.c.l.b16 %v1887
        %v1908 = vunpack.c.h.b16 %v1887
        %v1909 = vunpack.c.l.b16 %v1888
        %v1910 = vunpack.c.h.b16 %v1888
        %v1911 = vunpack.c.l.b16 %v1889
        %v1912 = vunpack.c.h.b16 %v1889
        %v1913 = vunpack.c.l.b16 %v1890
        %v1914 = vunpack.c.h.b16 %v1890
        %v1915 = vpack.c.b16 %v1899, %v1899
        %v1916 = vpack.c.b16 %v1900, %v1900
        %v1917 = vpack.c.b16 %v1901, %v1901
        %v1918 = vpack.c.b16 %v1902, %v1902
        %v1919 = vpack.c.b16 %v1903, %v1903
        %v1920 = vpack.c.b16 %v1904, %v1904
        %v1921 = vpack.c.b16 %v1905, %v1905
        %v1922 = vpack.c.b16 %v1906, %v1906
        %v1923 = vpack.c.b16 %v1907, %v1907
        %v1924 = vpack.c.b16 %v1908, %v1908
        %v1925 = vpack.c.b16 %v1909, %v1909
        %v1926 = vpack.c.b16 %v1910, %v1910
        %v1927 = vpack.c.b16 %v1911, %v1911
        %v1928 = vpack.c.b16 %v1912, %v1912
        %v1929 = vpack.c.b16 %v1913, %v1913
        %v1930 = vpack.c.b16 %v1914, %v1914
        %v1931 = vrot.slane %v1915, 5
        %v1932 = vrot.slane %v1931, 4
        %v1933 = vrot.slane %v1916, 5
        %v1934 = vsel %vm790, %v1932, %v1933
        %v1935 = vrot.slane %v1917, 5
        %v1936 = vrot.slane %v1935, 4
        %v1937 = vrot.slane %v1918, 5
        %v1938 = vsel %vm790, %v1936, %v1937
        %v1939 = vrot.slane %v1919, 5
        %v1940 = vrot.slane %v1939, 4
        %v1941 = vrot.slane %v1920, 5
        %v1942 = vsel %vm790, %v1940, %v1941
        %v1943 = vrot.slane %v1921, 5
        %v1944 = vrot.slane %v1943, 4
        %v1945 = vrot.slane %v1922, 5
        %v1946 = vsel %vm790, %v1944, %v1945
        %v1947 = vrot.slane %v1923, 5
        %v1948 = vrot.slane %v1947, 4
        %v1949 = vrot.slane %v1924, 5
        %v1950 = vsel %vm790, %v1948, %v1949
        %v1951 = vrot.slane %v1925, 5
        %v1952 = vrot.slane %v1951, 4
        %v1953 = vrot.slane %v1926, 5
        %v1954 = vsel %vm790, %v1952, %v1953
        %v1955 = vrot.slane %v1927, 5
        %v1956 = vrot.slane %v1955, 4
        %v1957 = vrot.slane %v1928, 5
        %v1958 = vsel %vm790, %v1956, %v1957
        %v1959 = vrot.slane %v1929, 5
        %v1960 = vrot.slane %v1959, 4
        %v1961 = vrot.slane %v1930, 5
        %v1962 = vsel %vm790, %v1960, %v1961
        %s1963 = scalar_lea.vmem %s1, 32
        %v1964 = vld [vmem:[%s1963] sm:$0xf]
        %v1965 = vunpack.c.l.b16 %v1934
        %v1966 = vunpack.c.l.b16 %v1938
        %v1967 = vunpack.c.l.b16 %v1942
        %v1968 = vunpack.c.l.b16 %v1946
        %v1969 = vunpack.c.l.b16 %v1950
        %v1970 = vunpack.c.l.b16 %v1954
        %v1971 = vunpack.c.l.b16 %v1958
        %v1972 = vunpack.c.l.b16 %v1962
        %v1973 = vpack.c.b16 %v1966, %v1965
        %v1974 = vpack.c.b16 %v1968, %v1967
        %v1975 = vpack.c.b16 %v1970, %v1969
        %v1976 = vpack.c.b16 %v1972, %v1971
        %v1978 = vsel %vm195, %v1973, 0
        %v1981 = vsel %vm195, %v1974, 0
        %v1984 = vsel %vm195, %v1975, 0
        %v1987 = vsel %vm195, %v1976, 0
        %v1990 = vsel %vm571, %v1964, 0
        %1992 = vmatprep.subr.bf16.mxu0 0
        %1993 = vmatpush1.bf16.msra.mxu0 %v1990
        %1994 = vmatprep.subr.bf16.mxu0 0
        %1995 = vmatpush1.bf16.msra.mxu0 0
        %1996 = vmatprep.subr.bf16.mxu0 0
        %1997 = vmatpush1.bf16.msra.mxu0 0
        %1998 = vmatprep.subr.bf16.mxu0 0
        %1999 = vmatpush1.bf16.msra.mxu0 0
        %2000 = vmatprep.subr.bf16.mxu0 0
        %2001 = vmatpush1.bf16.msra.mxu0 0
        %2002 = vmatprep.subr.bf16.mxu0 0
        %2003 = vmatpush1.bf16.msra.mxu0 0
        %2004 = vmatprep.subr.bf16.mxu0 0
        %2005 = vmatpush1.bf16.msra.mxu0 0
        %2006 = vmatprep.subr.bf16.mxu0 0
        %2007 = vmatpush1.bf16.msra.mxu0 0
        %2008 = vmatprep.subr.bf16.mxu0 0
        %2009 = vmatpush1.bf16.msra.mxu0 0
        %2010 = vmatprep.subr.bf16.mxu0 0
        %2011 = vmatpush1.bf16.msra.mxu0 0
        %2012 = vmatprep.subr.bf16.mxu0 0
        %2013 = vmatpush1.bf16.msra.mxu0 0
        %2014 = vmatprep.subr.bf16.mxu0 0
        %2015 = vmatpush1.bf16.msra.mxu0 0
        %2016 = vmatprep.subr.bf16.mxu0 0
        %2017 = vmatpush1.bf16.msra.mxu0 0
        %2018 = vmatprep.subr.bf16.mxu0 0
        %2019 = vmatpush1.bf16.msra.mxu0 0
        %2020 = vmatprep.subr.bf16.mxu0 0
        %2021 = vmatpush1.bf16.msra.mxu0 0
        %2022 = vmatprep.subr.bf16.mxu0 0
        %2023 = vmatpush1.bf16.msra.mxu0 0
        %2024 = vmatprep.mubr.bf16.mxu0 0
        %2025 = vmatmul.mubr.bf16.gmra.mrb[0].mxu0 %v1978
        %v2026 = vpop.f32.mrb[0].mxu0
        %v2027 = vadd.f32 0.0, %v2026
        %v2028 = vpop.f32.mrb[0].mxu0
        %v2029 = vpop.f32.mrb[0].mxu0
        %v2030 = vadd.f32 0.0, %v2029
        %v2031 = vpop.f32.mrb[0].mxu0
        %2032 = vmatprep.mubr.bf16.mxu0 0
        %2033 = vmatmul.mubr.bf16.gmra.mrb[0].mxu0 %v1981
        %v2034 = vpop.f32.mrb[0].mxu0
        %v2035 = vadd.f32 0.0, %v2034
        %v2036 = vpop.f32.mrb[0].mxu0
        %v2037 = vpop.f32.mrb[0].mxu0
        %v2038 = vadd.f32 0.0, %v2037
        %v2039 = vpop.f32.mrb[0].mxu0
        %2040 = vmatprep.mubr.bf16.mxu0 0
        %2041 = vmatmul.mubr.bf16.gmra.mrb[0].mxu0 %v1984
        %v2042 = vpop.f32.mrb[0].mxu0
        %v2043 = vadd.f32 0.0, %v2042
        %v2044 = vpop.f32.mrb[0].mxu0
        %v2045 = vpop.f32.mrb[0].mxu0
        %v2046 = vadd.f32 0.0, %v2045
        %v2047 = vpop.f32.mrb[0].mxu0
        %2048 = vmatprep.mubr.bf16.mxu0 0
        %2049 = vmatmul.mubr.bf16.gmra.mrb[0].mxu0 %v1987
        %v2050 = vpop.f32.mrb[0].mxu0
        %v2051 = vadd.f32 0.0, %v2050
        %v2052 = vpop.f32.mrb[0].mxu0
        %v2053 = vpop.f32.mrb[0].mxu0
        %v2054 = vadd.f32 0.0, %v2053
        %v2055 = vpop.f32.mrb[0].mxu0
        %2056 = vdwg.mxu0
        %v2057 = vadd.f32 %v1853, %v2027
        %v2058 = vadd.f32 %v1856, %v2030
        %v2059 = vadd.f32 %v1861, %v2035
        %v2060 = vadd.f32 %v1864, %v2038
        %v2061 = vadd.f32 %v1869, %v2043
        %v2062 = vadd.f32 %v1872, %v2046
        %v2063 = vadd.f32 %v1877, %v2051
        %v2064 = vadd.f32 %v1880, %v2054
        %s2065 = scalar_lea.vmem [#allocation2], 16
        %v2066 = vld [vmem:[%s2065] sm:$0xf]
        %v2067 = vld [vmem:[%s2065 + $0x8] sm:$0xf]
        %v2068 = vld [vmem:[%s2065 + $0x10] sm:$0xf]
        %v2069 = vld [vmem:[%s2065 + $0x18] sm:$0xf]
        %v2070 = vld [vmem:[%s2065 + $0x20] sm:$0xf]
        %v2071 = vld [vmem:[%s2065 + $0x28] sm:$0xf]
        %v2072 = vld [vmem:[%s2065 + $0x30] sm:$0xf]
        %v2073 = vld [vmem:[%s2065 + $0x38] sm:$0xf]
        %s2074 = scalar_lea.vmem %s1, 36
        %v2075 = vld [vmem:[%s2074] sm:$0xf]
        %v2084 = vunpack.c.l.b16 %v2066
        %v2085 = vunpack.c.l.b16 %v2067
        %v2086 = vunpack.c.l.b16 %v2068
        %v2087 = vunpack.c.l.b16 %v2069
        %v2088 = vunpack.c.l.b16 %v2070
        %v2089 = vunpack.c.l.b16 %v2071
        %v2090 = vunpack.c.l.b16 %v2072
        %v2091 = vunpack.c.l.b16 %v2073
        %v2092 = vpack.c.b16 %v2085, %v2084
        %v2093 = vpack.c.b16 %v2087, %v2086
        %v2094 = vpack.c.b16 %v2089, %v2088
        %v2095 = vpack.c.b16 %v2091, %v2090
        %v2097 = vsel %vm195, %v2092, 0
        %v2100 = vsel %vm195, %v2093, 0
        %v2103 = vsel %vm195, %v2094, 0
        %v2106 = vsel %vm195, %v2095, 0
        %v2109 = vsel %vm571, %v2075, 0
        %2111 = vmatprep.subr.bf16.mxu0 0
        %2112 = vmatpush1.bf16.msra.mxu0 %v2109
        %2113 = vmatprep.subr.bf16.mxu0 0
        %2114 = vmatpush1.bf16.msra.mxu0 0
        %2115 = vmatprep.subr.bf16.mxu0 0
        %2116 = vmatpush1.bf16.msra.mxu0 0
        %2117 = vmatprep.subr.bf16.mxu0 0
        %2118 = vmatpush1.bf16.msra.mxu0 0
        %2119 = vmatprep.subr.bf16.mxu0 0
        %2120 = vmatpush1.bf16.msra.mxu0 0
        %2121 = vmatprep.subr.bf16.mxu0 0
        %2122 = vmatpush1.bf16.msra.mxu0 0
        %2123 = vmatprep.subr.bf16.mxu0 0
        %2124 = vmatpush1.bf16.msra.mxu0 0
        %2125 = vmatprep.subr.bf16.mxu0 0
        %2126 = vmatpush1.bf16.msra.mxu0 0
        %2127 = vmatprep.subr.bf16.mxu0 0
        %2128 = vmatpush1.bf16.msra.mxu0 0
        %2129 = vmatprep.subr.bf16.mxu0 0
        %2130 = vmatpush1.bf16.msra.mxu0 0
        %2131 = vmatprep.subr.bf16.mxu0 0
        %2132 = vmatpush1.bf16.msra.mxu0 0
        %2133 = vmatprep.subr.bf16.mxu0 0
        %2134 = vmatpush1.bf16.msra.mxu0 0
        %2135 = vmatprep.subr.bf16.mxu0 0
        %2136 = vmatpush1.bf16.msra.mxu0 0
        %2137 = vmatprep.subr.bf16.mxu0 0
        %2138 = vmatpush1.bf16.msra.mxu0 0
        %2139 = vmatprep.subr.bf16.mxu0 0
        %2140 = vmatpush1.bf16.msra.mxu0 0
        %2141 = vmatprep.subr.bf16.mxu0 0
        %2142 = vmatpush1.bf16.msra.mxu0 0
        %2143 = vmatprep.mubr.bf16.mxu0 0
        %2144 = vmatmul.mubr.bf16.gmra.mrb[0].mxu0 %v2097
        %v2145 = vpop.f32.mrb[0].mxu0
        %v2146 = vadd.f32 0.0, %v2145
        %v2147 = vpop.f32.mrb[0].mxu0
        %v2148 = vpop.f32.mrb[0].mxu0
        %v2149 = vadd.f32 0.0, %v2148
        %v2150 = vpop.f32.mrb[0].mxu0
        %2151 = vmatprep.mubr.bf16.mxu0 0
        %2152 = vmatmul.mubr.bf16.gmra.mrb[0].mxu0 %v2100
        %v2153 = vpop.f32.mrb[0].mxu0
        %v2154 = vadd.f32 0.0, %v2153
        %v2155 = vpop.f32.mrb[0].mxu0
        %v2156 = vpop.f32.mrb[0].mxu0
        %v2157 = vadd.f32 0.0, %v2156
        %v2158 = vpop.f32.mrb[0].mxu0
        %2159 = vmatprep.mubr.bf16.mxu0 0
        %2160 = vmatmul.mubr.bf16.gmra.mrb[0].mxu0 %v2103
        %v2161 = vpop.f32.mrb[0].mxu0
        %v2162 = vadd.f32 0.0, %v2161
        %v2163 = vpop.f32.mrb[0].mxu0
        %v2164 = vpop.f32.mrb[0].mxu0
        %v2165 = vadd.f32 0.0, %v2164
        %v2166 = vpop.f32.mrb[0].mxu0
        %2167 = vmatprep.mubr.bf16.mxu0 0
        %2168 = vmatmul.mubr.bf16.gmra.mrb[0].mxu0 %v2106
        %v2169 = vpop.f32.mrb[0].mxu0
        %v2170 = vadd.f32 0.0, %v2169
        %v2171 = vpop.f32.mrb[0].mxu0
        %v2172 = vpop.f32.mrb[0].mxu0
        %v2173 = vadd.f32 0.0, %v2172
        %v2174 = vpop.f32.mrb[0].mxu0
        %2175 = vdwg.mxu0
        %v2176 = vadd.f32 %v2057, %v2146
        %v2177 = vadd.f32 %v2058, %v2149
        %v2178 = vadd.f32 %v2059, %v2154
        %v2179 = vadd.f32 %v2060, %v2157
        %v2180 = vadd.f32 %v2061, %v2162
        %v2181 = vadd.f32 %v2062, %v2165
        %v2182 = vadd.f32 %v2063, %v2170
        %v2183 = vadd.f32 %v2064, %v2173
        %v2184 = vld [vmem:[%s2065] sm:$0x1f]
        %v2185 = vld [vmem:[%s2065 + $0x8] sm:$0x1f]
        %v2186 = vld [vmem:[%s2065 + $0x10] sm:$0x1f]
        %v2187 = vld [vmem:[%s2065 + $0x18] sm:$0x1f]
        %v2188 = vld [vmem:[%s2065 + $0x20] sm:$0x1f]
        %v2189 = vld [vmem:[%s2065 + $0x28] sm:$0x1f]
        %v2190 = vld [vmem:[%s2065 + $0x30] sm:$0x1f]
        %v2191 = vld [vmem:[%s2065 + $0x38] sm:$0x1f]
        %v2200 = vunpack.c.l.b16 %v2184
        %v2201 = vunpack.c.h.b16 %v2184
        %v2202 = vunpack.c.l.b16 %v2185
        %v2203 = vunpack.c.h.b16 %v2185
        %v2204 = vunpack.c.l.b16 %v2186
        %v2205 = vunpack.c.h.b16 %v2186
        %v2206 = vunpack.c.l.b16 %v2187
        %v2207 = vunpack.c.h.b16 %v2187
        %v2208 = vunpack.c.l.b16 %v2188
        %v2209 = vunpack.c.h.b16 %v2188
        %v2210 = vunpack.c.l.b16 %v2189
        %v2211 = vunpack.c.h.b16 %v2189
        %v2212 = vunpack.c.l.b16 %v2190
        %v2213 = vunpack.c.h.b16 %v2190
        %v2214 = vunpack.c.l.b16 %v2191
        %v2215 = vunpack.c.h.b16 %v2191
        %v2216 = vpack.c.b16 %v2200, %v2200
        %v2217 = vpack.c.b16 %v2201, %v2201
        %v2218 = vpack.c.b16 %v2202, %v2202
        %v2219 = vpack.c.b16 %v2203, %v2203
        %v2220 = vpack.c.b16 %v2204, %v2204
        %v2221 = vpack.c.b16 %v2205, %v2205
        %v2222 = vpack.c.b16 %v2206, %v2206
        %v2223 = vpack.c.b16 %v2207, %v2207
        %v2224 = vpack.c.b16 %v2208, %v2208
        %v2225 = vpack.c.b16 %v2209, %v2209
        %v2226 = vpack.c.b16 %v2210, %v2210
        %v2227 = vpack.c.b16 %v2211, %v2211
        %v2228 = vpack.c.b16 %v2212, %v2212
        %v2229 = vpack.c.b16 %v2213, %v2213
        %v2230 = vpack.c.b16 %v2214, %v2214
        %v2231 = vpack.c.b16 %v2215, %v2215
        %v2233 = vshrl.u32 %v2216, 16
        %v2235 = vrot.slane %v2233, 4
        %v2236 = vshll.u32 %v2216, 16
        %v2238 = vrot.slane %v2236, 5
        %v2239 = vor.u32 %v2235, %v2238
        %v2240 = vrot.slane %v2239, 4
        %v2242 = vshll.u32 %v2217, 16
        %v2244 = vrot.slane %v2242, 5
        %v2245 = vsel %vm432, %v2240, %v2244
        %v2247 = vshrl.u32 %v2218, 16
        %v2249 = vrot.slane %v2247, 4
        %v2250 = vshll.u32 %v2218, 16
        %v2252 = vrot.slane %v2250, 5
        %v2253 = vor.u32 %v2249, %v2252
        %v2254 = vrot.slane %v2253, 4
        %v2256 = vshll.u32 %v2219, 16
        %v2258 = vrot.slane %v2256, 5
        %v2259 = vsel %vm432, %v2254, %v2258
        %v2261 = vshrl.u32 %v2220, 16
        %v2263 = vrot.slane %v2261, 4
        %v2264 = vshll.u32 %v2220, 16
        %v2266 = vrot.slane %v2264, 5
        %v2267 = vor.u32 %v2263, %v2266
        %v2268 = vrot.slane %v2267, 4
        %v2270 = vshll.u32 %v2221, 16
        %v2272 = vrot.slane %v2270, 5
        %v2273 = vsel %vm432, %v2268, %v2272
        %v2275 = vshrl.u32 %v2222, 16
        %v2277 = vrot.slane %v2275, 4
        %v2278 = vshll.u32 %v2222, 16
        %v2280 = vrot.slane %v2278, 5
        %v2281 = vor.u32 %v2277, %v2280
        %v2282 = vrot.slane %v2281, 4
        %v2284 = vshll.u32 %v2223, 16
        %v2286 = vrot.slane %v2284, 5
        %v2287 = vsel %vm432, %v2282, %v2286
        %v2289 = vshrl.u32 %v2224, 16
        %v2291 = vrot.slane %v2289, 4
        %v2292 = vshll.u32 %v2224, 16
        %v2294 = vrot.slane %v2292, 5
        %v2295 = vor.u32 %v2291, %v2294
        %v2296 = vrot.slane %v2295, 4
        %v2298 = vshll.u32 %v2225, 16
        %v2300 = vrot.slane %v2298, 5
        %v2301 = vsel %vm432, %v2296, %v2300
        %v2303 = vshrl.u32 %v2226, 16
        %v2305 = vrot.slane %v2303, 4
        %v2306 = vshll.u32 %v2226, 16
        %v2308 = vrot.slane %v2306, 5
        %v2309 = vor.u32 %v2305, %v2308
        %v2310 = vrot.slane %v2309, 4
        %v2312 = vshll.u32 %v2227, 16
        %v2314 = vrot.slane %v2312, 5
        %v2315 = vsel %vm432, %v2310, %v2314
        %v2317 = vshrl.u32 %v2228, 16
        %v2319 = vrot.slane %v2317, 4
        %v2320 = vshll.u32 %v2228, 16
        %v2322 = vrot.slane %v2320, 5
        %v2323 = vor.u32 %v2319, %v2322
        %v2324 = vrot.slane %v2323, 4
        %v2326 = vshll.u32 %v2229, 16
        %v2328 = vrot.slane %v2326, 5
        %v2329 = vsel %vm432, %v2324, %v2328
        %v2331 = vshrl.u32 %v2230, 16
        %v2333 = vrot.slane %v2331, 4
        %v2334 = vshll.u32 %v2230, 16
        %v2336 = vrot.slane %v2334, 5
        %v2337 = vor.u32 %v2333, %v2336
        %v2338 = vrot.slane %v2337, 4
        %v2340 = vshll.u32 %v2231, 16
        %v2342 = vrot.slane %v2340, 5
        %v2343 = vsel %vm432, %v2338, %v2342
        %s2344 = scalar_lea.vmem %s1, 40
        %v2345 = vld [vmem:[%s2344] sm:$0xf]
        %v2346 = vunpack.c.l.b16 %v2245
        %v2347 = vunpack.c.l.b16 %v2259
        %v2348 = vunpack.c.l.b16 %v2273
        %v2349 = vunpack.c.l.b16 %v2287
        %v2350 = vunpack.c.l.b16 %v2301
        %v2351 = vunpack.c.l.b16 %v2315
        %v2352 = vunpack.c.l.b16 %v2329
        %v2353 = vunpack.c.l.b16 %v2343
        %v2354 = vpack.c.b16 %v2347, %v2346
        %v2355 = vpack.c.b16 %v2349, %v2348
        %v2356 = vpack.c.b16 %v2351, %v2350
        %v2357 = vpack.c.b16 %v2353, %v2352
        %v2359 = vsel %vm195, %v2354, 0
        %v2362 = vsel %vm195, %v2355, 0
        %v2365 = vsel %vm195, %v2356, 0
        %v2368 = vsel %vm195, %v2357, 0
        %v2371 = vsel %vm571, %v2345, 0
        %2373 = vmatprep.subr.bf16.mxu0 0
        %2374 = vmatpush1.bf16.msra.mxu0 %v2371
        %2375 = vmatprep.subr.bf16.mxu0 0
        %2376 = vmatpush1.bf16.msra.mxu0 0
        %2377 = vmatprep.subr.bf16.mxu0 0
        %2378 = vmatpush1.bf16.msra.mxu0 0
        %2379 = vmatprep.subr.bf16.mxu0 0
        %2380 = vmatpush1.bf16.msra.mxu0 0
        %2381 = vmatprep.subr.bf16.mxu0 0
        %2382 = vmatpush1.bf16.msra.mxu0 0
        %2383 = vmatprep.subr.bf16.mxu0 0
        %2384 = vmatpush1.bf16.msra.mxu0 0
        %2385 = vmatprep.subr.bf16.mxu0 0
        %2386 = vmatpush1.bf16.msra.mxu0 0
        %2387 = vmatprep.subr.bf16.mxu0 0
        %2388 = vmatpush1.bf16.msra.mxu0 0
        %2389 = vmatprep.subr.bf16.mxu0 0
        %2390 = vmatpush1.bf16.msra.mxu0 0
        %2391 = vmatprep.subr.bf16.mxu0 0
        %2392 = vmatpush1.bf16.msra.mxu0 0
        %2393 = vmatprep.subr.bf16.mxu0 0
        %2394 = vmatpush1.bf16.msra.mxu0 0
        %2395 = vmatprep.subr.bf16.mxu0 0
        %2396 = vmatpush1.bf16.msra.mxu0 0
        %2397 = vmatprep.subr.bf16.mxu0 0
        %2398 = vmatpush1.bf16.msra.mxu0 0
        %2399 = vmatprep.subr.bf16.mxu0 0
        %2400 = vmatpush1.bf16.msra.mxu0 0
        %2401 = vmatprep.subr.bf16.mxu0 0
        %2402 = vmatpush1.bf16.msra.mxu0 0
        %2403 = vmatprep.subr.bf16.mxu0 0
        %2404 = vmatpush1.bf16.msra.mxu0 0
        %2405 = vmatprep.mubr.bf16.mxu0 0
        %2406 = vmatmul.mubr.bf16.gmra.mrb[0].mxu0 %v2359
        %v2407 = vpop.f32.mrb[0].mxu0
        %v2408 = vadd.f32 0.0, %v2407
        %v2409 = vpop.f32.mrb[0].mxu0
        %v2410 = vpop.f32.mrb[0].mxu0
        %v2411 = vadd.f32 0.0, %v2410
        %v2412 = vpop.f32.mrb[0].mxu0
        %2413 = vmatprep.mubr.bf16.mxu0 0
        %2414 = vmatmul.mubr.bf16.gmra.mrb[0].mxu0 %v2362
        %v2415 = vpop.f32.mrb[0].mxu0
        %v2416 = vadd.f32 0.0, %v2415
        %v2417 = vpop.f32.mrb[0].mxu0
        %v2418 = vpop.f32.mrb[0].mxu0
        %v2419 = vadd.f32 0.0, %v2418
        %v2420 = vpop.f32.mrb[0].mxu0
        %2421 = vmatprep.mubr.bf16.mxu0 0
        %2422 = vmatmul.mubr.bf16.gmra.mrb[0].mxu0 %v2365
        %v2423 = vpop.f32.mrb[0].mxu0
        %v2424 = vadd.f32 0.0, %v2423
        %v2425 = vpop.f32.mrb[0].mxu0
        %v2426 = vpop.f32.mrb[0].mxu0
        %v2427 = vadd.f32 0.0, %v2426
        %v2428 = vpop.f32.mrb[0].mxu0
        %2429 = vmatprep.mubr.bf16.mxu0 0
        %2430 = vmatmul.mubr.bf16.gmra.mrb[0].mxu0 %v2368
        %v2431 = vpop.f32.mrb[0].mxu0
        %v2432 = vadd.f32 0.0, %v2431
        %v2433 = vpop.f32.mrb[0].mxu0
        %v2434 = vpop.f32.mrb[0].mxu0
        %v2435 = vadd.f32 0.0, %v2434
        %v2436 = vpop.f32.mrb[0].mxu0
        %2437 = vdwg.mxu0
        %v2438 = vadd.f32 %v2176, %v2408
        %v2439 = vadd.f32 %v2177, %v2411
        %v2440 = vadd.f32 %v2178, %v2416
        %v2441 = vadd.f32 %v2179, %v2419
        %v2442 = vadd.f32 %v2180, %v2424
        %v2443 = vadd.f32 %v2181, %v2427
        %v2444 = vadd.f32 %v2182, %v2432
        %v2445 = vadd.f32 %v2183, %v2435
        %v2446 = vld [vmem:[%s2065] sm:$0x1e]
        %v2447 = vld [vmem:[%s2065 + $0x8] sm:$0x1e]
        %v2448 = vld [vmem:[%s2065 + $0x10] sm:$0x1e]
        %v2449 = vld [vmem:[%s2065 + $0x18] sm:$0x1e]
        %v2450 = vld [vmem:[%s2065 + $0x20] sm:$0x1e]
        %v2451 = vld [vmem:[%s2065 + $0x28] sm:$0x1e]
        %v2452 = vld [vmem:[%s2065 + $0x30] sm:$0x1e]
        %v2453 = vld [vmem:[%s2065 + $0x38] sm:$0x1e]
        %v2462 = vunpack.c.l.b16 %v2446
        %v2463 = vunpack.c.h.b16 %v2446
        %v2464 = vunpack.c.l.b16 %v2447
        %v2465 = vunpack.c.h.b16 %v2447
        %v2466 = vunpack.c.l.b16 %v2448
        %v2467 = vunpack.c.h.b16 %v2448
        %v2468 = vunpack.c.l.b16 %v2449
        %v2469 = vunpack.c.h.b16 %v2449
        %v2470 = vunpack.c.l.b16 %v2450
        %v2471 = vunpack.c.h.b16 %v2450
        %v2472 = vunpack.c.l.b16 %v2451
        %v2473 = vunpack.c.h.b16 %v2451
        %v2474 = vunpack.c.l.b16 %v2452
        %v2475 = vunpack.c.h.b16 %v2452
        %v2476 = vunpack.c.l.b16 %v2453
        %v2477 = vunpack.c.h.b16 %v2453
        %v2478 = vpack.c.b16 %v2462, %v2462
        %v2479 = vpack.c.b16 %v2463, %v2463
        %v2480 = vpack.c.b16 %v2464, %v2464
        %v2481 = vpack.c.b16 %v2465, %v2465
        %v2482 = vpack.c.b16 %v2466, %v2466
        %v2483 = vpack.c.b16 %v2467, %v2467
        %v2484 = vpack.c.b16 %v2468, %v2468
        %v2485 = vpack.c.b16 %v2469, %v2469
        %v2486 = vpack.c.b16 %v2470, %v2470
        %v2487 = vpack.c.b16 %v2471, %v2471
        %v2488 = vpack.c.b16 %v2472, %v2472
        %v2489 = vpack.c.b16 %v2473, %v2473
        %v2490 = vpack.c.b16 %v2474, %v2474
        %v2491 = vpack.c.b16 %v2475, %v2475
        %v2492 = vpack.c.b16 %v2476, %v2476
        %v2493 = vpack.c.b16 %v2477, %v2477
        %v2494 = vrot.slane %v2478, 5
        %v2495 = vrot.slane %v2494, 4
        %v2496 = vrot.slane %v2479, 5
        %v2497 = vsel %vm790, %v2495, %v2496
        %v2498 = vrot.slane %v2480, 5
        %v2499 = vrot.slane %v2498, 4
        %v2500 = vrot.slane %v2481, 5
        %v2501 = vsel %vm790, %v2499, %v2500
        %v2502 = vrot.slane %v2482, 5
        %v2503 = vrot.slane %v2502, 4
        %v2504 = vrot.slane %v2483, 5
        %v2505 = vsel %vm790, %v2503, %v2504
        %v2506 = vrot.slane %v2484, 5
        %v2507 = vrot.slane %v2506, 4
        %v2508 = vrot.slane %v2485, 5
        %v2509 = vsel %vm790, %v2507, %v2508
        %v2510 = vrot.slane %v2486, 5
        %v2511 = vrot.slane %v2510, 4
        %v2512 = vrot.slane %v2487, 5
        %v2513 = vsel %vm790, %v2511, %v2512
        %v2514 = vrot.slane %v2488, 5
        %v2515 = vrot.slane %v2514, 4
        %v2516 = vrot.slane %v2489, 5
        %v2517 = vsel %vm790, %v2515, %v2516
        %v2518 = vrot.slane %v2490, 5
        %v2519 = vrot.slane %v2518, 4
        %v2520 = vrot.slane %v2491, 5
        %v2521 = vsel %vm790, %v2519, %v2520
        %v2522 = vrot.slane %v2492, 5
        %v2523 = vrot.slane %v2522, 4
        %v2524 = vrot.slane %v2493, 5
        %v2525 = vsel %vm790, %v2523, %v2524
        %s2526 = scalar_lea.vmem %s1, 44
        %v2527 = vld [vmem:[%s2526] sm:$0xf]
        %v2528 = vunpack.c.l.b16 %v2497
        %v2529 = vunpack.c.l.b16 %v2501
        %v2530 = vunpack.c.l.b16 %v2505
        %v2531 = vunpack.c.l.b16 %v2509
        %v2532 = vunpack.c.l.b16 %v2513
        %v2533 = vunpack.c.l.b16 %v2517
        %v2534 = vunpack.c.l.b16 %v2521
        %v2535 = vunpack.c.l.b16 %v2525
        %v2536 = vpack.c.b16 %v2529, %v2528
        %v2537 = vpack.c.b16 %v2531, %v2530
        %v2538 = vpack.c.b16 %v2533, %v2532
        %v2539 = vpack.c.b16 %v2535, %v2534
        %v2541 = vsel %vm195, %v2536, 0
        %v2544 = vsel %vm195, %v2537, 0
        %v2547 = vsel %vm195, %v2538, 0
        %v2550 = vsel %vm195, %v2539, 0
        %v2553 = vsel %vm571, %v2527, 0
        %2555 = vmatprep.subr.bf16.mxu0 0
        %2556 = vmatpush1.bf16.msra.mxu0 %v2553
        %2557 = vmatprep.subr.bf16.mxu0 0
        %2558 = vmatpush1.bf16.msra.mxu0 0
        %2559 = vmatprep.subr.bf16.mxu0 0
        %2560 = vmatpush1.bf16.msra.mxu0 0
        %2561 = vmatprep.subr.bf16.mxu0 0
        %2562 = vmatpush1.bf16.msra.mxu0 0
        %2563 = vmatprep.subr.bf16.mxu0 0
        %2564 = vmatpush1.bf16.msra.mxu0 0
        %2565 = vmatprep.subr.bf16.mxu0 0
        %2566 = vmatpush1.bf16.msra.mxu0 0
        %2567 = vmatprep.subr.bf16.mxu0 0
        %2568 = vmatpush1.bf16.msra.mxu0 0
        %2569 = vmatprep.subr.bf16.mxu0 0
        %2570 = vmatpush1.bf16.msra.mxu0 0
        %2571 = vmatprep.subr.bf16.mxu0 0
        %2572 = vmatpush1.bf16.msra.mxu0 0
        %2573 = vmatprep.subr.bf16.mxu0 0
        %2574 = vmatpush1.bf16.msra.mxu0 0
        %2575 = vmatprep.subr.bf16.mxu0 0
        %2576 = vmatpush1.bf16.msra.mxu0 0
        %2577 = vmatprep.subr.bf16.mxu0 0
        %2578 = vmatpush1.bf16.msra.mxu0 0
        %2579 = vmatprep.subr.bf16.mxu0 0
        %2580 = vmatpush1.bf16.msra.mxu0 0
        %2581 = vmatprep.subr.bf16.mxu0 0
        %2582 = vmatpush1.bf16.msra.mxu0 0
        %2583 = vmatprep.subr.bf16.mxu0 0
        %2584 = vmatpush1.bf16.msra.mxu0 0
        %2585 = vmatprep.subr.bf16.mxu0 0
        %2586 = vmatpush1.bf16.msra.mxu0 0
        %2587 = vmatprep.mubr.bf16.mxu0 0
        %2588 = vmatmul.mubr.bf16.gmra.mrb[0].mxu0 %v2541
        %v2589 = vpop.f32.mrb[0].mxu0
        %v2590 = vadd.f32 0.0, %v2589
        %v2591 = vpop.f32.mrb[0].mxu0
        %v2592 = vpop.f32.mrb[0].mxu0
        %v2593 = vadd.f32 0.0, %v2592
        %v2594 = vpop.f32.mrb[0].mxu0
        %2595 = vmatprep.mubr.bf16.mxu0 0
        %2596 = vmatmul.mubr.bf16.gmra.mrb[0].mxu0 %v2544
        %v2597 = vpop.f32.mrb[0].mxu0
        %v2598 = vadd.f32 0.0, %v2597
        %v2599 = vpop.f32.mrb[0].mxu0
        %v2600 = vpop.f32.mrb[0].mxu0
        %v2601 = vadd.f32 0.0, %v2600
        %v2602 = vpop.f32.mrb[0].mxu0
        %2603 = vmatprep.mubr.bf16.mxu0 0
        %2604 = vmatmul.mubr.bf16.gmra.mrb[0].mxu0 %v2547
        %v2605 = vpop.f32.mrb[0].mxu0
        %v2606 = vadd.f32 0.0, %v2605
        %v2607 = vpop.f32.mrb[0].mxu0
        %v2608 = vpop.f32.mrb[0].mxu0
        %v2609 = vadd.f32 0.0, %v2608
        %v2610 = vpop.f32.mrb[0].mxu0
        %2611 = vmatprep.mubr.bf16.mxu0 0
        %2612 = vmatmul.mubr.bf16.gmra.mrb[0].mxu0 %v2550
        %v2613 = vpop.f32.mrb[0].mxu0
        %v2614 = vadd.f32 0.0, %v2613
        %v2615 = vpop.f32.mrb[0].mxu0
        %v2616 = vpop.f32.mrb[0].mxu0
        %v2617 = vadd.f32 0.0, %v2616
        %v2618 = vpop.f32.mrb[0].mxu0
        %2619 = vdwg.mxu0
        %v2620 = vadd.f32 %v2438, %v2590
        %v2621 = vadd.f32 %v2439, %v2593
        %v2622 = vadd.f32 %v2440, %v2598
        %v2623 = vadd.f32 %v2441, %v2601
        %v2624 = vadd.f32 %v2442, %v2606
        %v2625 = vadd.f32 %v2443, %v2609
        %v2626 = vadd.f32 %v2444, %v2614
        %v2627 = vadd.f32 %v2445, %v2617
        %v2628 = vld [vmem:[%s2] sm:$0x1]
        %v2630 = vlaneseq
        %v2631 = vshrl.u32 %v2630, 7
        %v2632 = vsub.s32 0, %v2631
        %v2633 = vrot.slane %v2628, %v2632
        %v2635 = vadd.f32 %v2620, %v2633
        %v2636 = vadd.f32 %v2621, %v2633
        %v2637 = vadd.f32 %v2622, %v2633
        %v2638 = vadd.f32 %v2623, %v2633
        %v2639 = vadd.f32 %v2624, %v2633
        %v2640 = vadd.f32 %v2625, %v2633
        %v2641 = vadd.f32 %v2626, %v2633
        %v2642 = vadd.f32 %v2627, %v2633
        %v2643 = vpack.c.bf16 %v2635, %v2635
        %v2644 = vpack.c.bf16 %v2636, %v2636
        %v2645 = vpack.c.bf16 %v2637, %v2637
        %v2646 = vpack.c.bf16 %v2638, %v2638
        %v2647 = vpack.c.bf16 %v2639, %v2639
        %v2648 = vpack.c.bf16 %v2640, %v2640
        %v2649 = vpack.c.bf16 %v2641, %v2641
        %v2650 = vpack.c.bf16 %v2642, %v2642
        %s2651 = scalar_lea.vmem %s192, 4
        %2652 = vst.msk [vmem:[%s2651] sm:$0xf] %vm1510, %v2643
        %2653 = vst.msk [vmem:[%s2651 + $0x8] sm:$0xf] %vm1510, %v2644
        %2654 = vst.msk [vmem:[%s2651 + $0x10] sm:$0xf] %vm1510, %v2645
        %2655 = vst.msk [vmem:[%s2651 + $0x18] sm:$0xf] %vm1510, %v2646
        %2656 = vst.msk [vmem:[%s2651 + $0x20] sm:$0xf] %vm1510, %v2647
        %2657 = vst.msk [vmem:[%s2651 + $0x28] sm:$0xf] %vm1510, %v2648
        %2658 = vst.msk [vmem:[%s2651 + $0x30] sm:$0xf] %vm1510, %v2649
        %2659 = vst.msk [vmem:[%s2651 + $0x38] sm:$0xf] %vm1510, %v2650
        %s2660 = smul.u32 8, %s17
        %p2661 = scmp.lt.s32.totalorder %s2660, 15
        %s2662 = scalar_select %p2661, %s2660, 15
        %s2663 = smul.addr %s2662, 2
        %s2664 = smul.addr %s2663, 4
        %s2665 = scalar_lea.vmem %s3, %s2664
        // Predicated region
        $region37: #{tpu_custom_call.1} parent=31 // pred_check
          %p2666 = pneg %p103
        $region38: #{tpu_custom_call.1} parent=31 // pred_check_branch
          %2668 = sbr.rel (%p2666) target = $region40
        $region39: #{tpu_custom_call.1} parent=31 // pred_region
          %s2669 = smul.u32 8, %s17
        $region40: #{tpu_custom_call.1} parent=31 // pred_fallthru
          _
      $region32: #{tpu_custom_call.1} parent=5 // pred_fallthru
        _
      %p2670 = scmp.le.s32.totalorder 2, %s12
      // Predicated region
      $region41: #{tpu_custom_call.1} parent=5 // pred_check
        %p2671 = pneg %p2670
      $region42: #{tpu_custom_call.1} parent=5 // pred_check_branch
        %2673 = sbr.rel (%p2671) target = $region44
      $region43: #{tpu_custom_call.1} parent=5 // pred_region
        %s2674 = ssub.s32 %s12, 2
        // Predicated region
        $region45: #{tpu_custom_call.1} parent=43 // pred_check
          %p2675 = pneg %p109
        $region46: #{tpu_custom_call.1} parent=43 // pred_check_branch
          %2677 = sbr.rel (%p2675) target = $region48
        $region47: #{tpu_custom_call.1} parent=43 // pred_region
          %s2678 = smul.u32 8, %s18
          %p2679 = scmp.lt.s32.totalorder %s2678, 15
          %s2680 = scalar_select %p2679, %s2678, 15
          %s2681 = smul.addr %s2680, 2
          %s2682 = smul.addr %s2681, 4
          %s2683 = scalar_lea.vmem %s3, %s2682
        $region48: #{tpu_custom_call.1} parent=43 // pred_fallthru
          _
      $region44: #{tpu_custom_call.1} parent=5 // pred_fallthru
        _
    $region6: #{tpu_custom_call.1} parent=1 // loop_footer
      %s16 = sadd.s32 1, %s12
    $region7: #{tpu_custom_call.1} parent=1 // loop_footer_branch
      %11 = sbr.rel target = $region3
    $region8: #{tpu_custom_call.1} parent=1 // loop_exit
      _
    %2684 = vsyncpa [#allocation4], 1
    %s2685 = scalar_lea.sflag [#allocation4], 1
    %2686 = vsyncpa %s2685, 1

</llo_original>
